<compile_context>
chip_gen: v5e
topology: v5e:2x2
jax: 0.10.0
libtpu: 0.0.40
codegen_flags: <defaults>
</compile_context>

<pallas_src>
import jax
import jax.numpy as jnp
from jax.experimental import pallas as pl
from jax.experimental.pallas import tpu as pltpu

# ---- static, TPU-friendly sizes ------------------------------------------
N_PER_GRAPH = 8                                   # nodes per ring graph
GRAPHS_PER_BATCH = 16                             # graphs per node slab
NODES_PER_BATCH = N_PER_GRAPH * GRAPHS_PER_BATCH  # 128 nodes = 1 MXU tile edge
NUM_BATCHES = 4                                   # total node slabs
SLABS_PER_STEP = 2                                # slabs co-resident per grid step
F_IN = 5                                          # raw input feature dim
F_PAD = 8                                         # padded (sublane-aligned)
HID_PAD = 128                                     # 16/32/64 padded to one lane tile
NUM_CLASSES = 2


def gnn_kernel(a_ref, x_ref, w_ref, b_ref, p_ref, out_ref):
    """Processes SLABS_PER_STEP node slabs (128 nodes each) per grid step.

    a_ref  : [128, 128]           bf16 sym-normalized adjacency (grid-invariant)
    x_ref  : [S, 128, F_PAD]      bf16 node features for S slabs
    w_ref  : [4, 128, 128]        bf16 packed weights (W1..W3, Wfc), zero-padded
    b_ref  : [4, 128]             f32 packed biases, zero-padded
    p_ref  : [G, 128]             bf16 mean-pool matrix (grid-invariant)
    out_ref: [S, G, 128]          f32 log-probs (valid cols [:NUM_CLASSES])
    """
    f32 = jnp.float32
    bf16 = jnp.bfloat16
    S = SLABS_PER_STEP

    a = a_ref[...]                           # [128, 128] bf16
    w1 = w_ref[0][:F_PAD, :]                 # [F_PAD, 128] bf16
    w2 = w_ref[1]
    w3 = w_ref[2]
    wfc = w_ref[3]

    def wide_bias(i):                        # [1, 128*S] f32 (slab-replicated)
        row = b_ref[i:i + 1, :]
        return jnp.concatenate([row] * S, axis=1)

    def widen(parts):                        # S x [128,128] f32 -> [128, 128*S] bf16
        return jnp.concatenate([p.astype(bf16) for p in parts], axis=1)

    # ---- GCNConv1: A @ (X @ W1) + b1, ReLU (per-slab X@W, 256-lane A@H) ----
    parts = [jnp.dot(x_ref[s], w1, preferred_element_type=f32) for s in range(S)]
    h = jnp.dot(a, widen(parts), preferred_element_type=f32)      # [128, 128*S]
    h = jnp.maximum(h + wide_bias(0), 0.0).astype(bf16)           # fused bias+ReLU+cast

    # ---- GCNConv2 / GCNConv3 -----------------------------------------------
    for li, w in ((1, w2), (2, w3)):
        parts = [jnp.dot(h[:, s * HID_PAD:(s + 1) * HID_PAD], w,
                         preferred_element_type=f32) for s in range(S)]
        h = jnp.dot(a, widen(parts), preferred_element_type=f32)
        h = jnp.maximum(h + wide_bias(li), 0.0).astype(bf16)

    # ---- global_mean_pool: P[G,128] @ H[128,128*S] -> [G, 128*S] -----------
    pooled = jnp.dot(p_ref[...], h, preferred_element_type=f32)

    # ---- fc + masked log_softmax (per slab, lane-dense [G,128] store) ------
    bfc = b_ref[3:4, :]
    col = jax.lax.broadcasted_iota(jnp.int32, (pooled.shape[0], HID_PAD), 1)
    valid = col < NUM_CLASSES
    for s in range(S):
        ps = pooled[:, s * HID_PAD:(s + 1) * HID_PAD].astype(bf16)
        logits = jnp.dot(ps, wfc, preferred_element_type=f32) + bfc
        logits = jnp.where(valid, logits, jnp.float32(-1e30))
        m = jnp.max(logits, axis=1, keepdims=True)
        z = logits - m
        e = jnp.where(valid, jnp.exp(z), 0.0)
        lse = jnp.log(jnp.sum(e, axis=1, keepdims=True))
        out_ref[s] = z - lse                 # lanes >= NUM_CLASSES are junk by design


def gnn_forward(a_hat, x_pad, w_slab, b_slab, pool_mat):
    B, n_pad, f_pad = x_pad.shape
    g = pool_mat.shape[0]
    assert B % SLABS_PER_STEP == 0
    steps = B // SLABS_PER_STEP

    flops_per_slab = (
        2 * n_pad * f_pad * HID_PAD              # X @ W1
        + 2 * 2 * n_pad * HID_PAD * HID_PAD      # H @ W2, H @ W3
        + 3 * 2 * n_pad * n_pad * HID_PAD        # three A @ H propagations
        + 2 * g * n_pad * HID_PAD                # pooling matmul
        + 2 * g * HID_PAD * HID_PAD              # fc
    )
    bytes_invariant = (2 * (n_pad * n_pad + 4 * HID_PAD * HID_PAD + g * n_pad)
                       + 4 * 4 * HID_PAD)                     # bf16 A/W/P + f32 b
    bytes_per_slab = 2 * n_pad * f_pad + 4 * g * HID_PAD      # bf16 X in, f32 out
    cost = pl.CostEstimate(
        flops=B * flops_per_slab,
        transcendentals=B * g * (HID_PAD + 1),
        bytes_accessed=bytes_invariant + B * bytes_per_slab,
    )

    out = pl.pallas_call(
        gnn_kernel,
        out_shape=jax.ShapeDtypeStruct((B, g, HID_PAD), jnp.float32),
        grid=(steps,),
        in_specs=[
            pl.BlockSpec((n_pad, n_pad), lambda i: (0, 0)),                    # A_hat (invariant)
            pl.BlockSpec((SLABS_PER_STEP, n_pad, f_pad), lambda i: (i, 0, 0)),  # X slabs
            pl.BlockSpec((4, HID_PAD, HID_PAD), lambda i: (0, 0, 0)),          # weight slab (invariant)
            pl.BlockSpec((4, HID_PAD), lambda i: (0, 0)),                      # bias slab (invariant)
            pl.BlockSpec((g, n_pad), lambda i: (0, 0)),                        # pool matrix (invariant)
        ],
        out_specs=pl.BlockSpec((SLABS_PER_STEP, g, HID_PAD), lambda i: (i, 0, 0)),
        compiler_params=pltpu.CompilerParams(
            dimension_semantics=("parallel",),   # 2 steps -> one per TC on v7x
        ),
        cost_estimate=cost,
    )(a_hat, x_pad, w_slab, b_slab, pool_mat)

    # strip lane padding: [B, G, HID_PAD] -> [B*G, NUM_CLASSES]
    return out[:, :, :NUM_CLASSES].reshape(B * g, NUM_CLASSES)


# ---- host-side parameter / graph construction ----------------------------
def glorot(key, shape):
    fan_in, fan_out = shape
    limit = (6.0 / (fan_in + fan_out)) ** 0.5
    return jax.random.uniform(key, shape, jnp.float32, -limit, limit)


def make_params(key):
    ks = jax.random.split(key, 8)

    def lin(kw, kb, fi, fo):
        return glorot(kw, (fi, fo)), 0.1 * jax.random.normal(kb, (fo,), jnp.float32)

    return (lin(ks[0], ks[1], F_IN, 16),
            lin(ks[2], ks[3], 16, 32),
            lin(ks[4], ks[5], 32, 64),
            lin(ks[6], ks[7], 64, NUM_CLASSES))


def pack_params(params):
    """Pack the 4 (W, b) pairs into one zero-padded weight slab + bias slab."""
    w_slab = jnp.zeros((4, HID_PAD, HID_PAD), jnp.float32)
    b_slab = jnp.zeros((4, HID_PAD), jnp.float32)
    for i, (w, b) in enumerate(params):
        w_slab = w_slab.at[i, :w.shape[0], :w.shape[1]].set(w)
        b_slab = b_slab.at[i, :b.shape[0]].set(b)
    return w_slab, b_slab


def build_batch_graph():
    """GRAPHS_PER_BATCH ring graphs of N_PER_GRAPH nodes each."""
    src, dst = [], []
    for g in range(GRAPHS_PER_BATCH):
        off = g * N_PER_GRAPH
        for i in range(N_PER_GRAPH):
            j = (i + 1) % N_PER_GRAPH
            src += [off + i, off + j]
            dst += [off + j, off + i]
    edge_index = jnp.array([src, dst], dtype=jnp.int32)
    batch = jnp.repeat(jnp.arange(GRAPHS_PER_BATCH, dtype=jnp.int32), N_PER_GRAPH)
    return edge_index, batch


def build_a_hat(edge_index, n_nodes):
    """Dense D^-1/2 (A + I) D^-1/2 (GCNConv normalization)."""
    src, dst = edge_index[0], edge_index[1]
    adj = jnp.zeros((n_nodes, n_nodes), jnp.float32).at[src, dst].set(1.0)
    adj = adj + jnp.eye(n_nodes, dtype=jnp.float32)
    deg = jnp.sum(adj, axis=1)
    dinv = jnp.where(deg > 0, 1.0 / jnp.sqrt(deg), 0.0)
    return dinv[:, None] * adj * dinv[None, :]


def build_pool_mat(batch, n_graphs):
    """[G, N] mean-pooling matrix."""
    onehot = (batch[None, :] == jnp.arange(n_graphs)[:, None]).astype(jnp.float32)
    counts = jnp.sum(onehot, axis=1, keepdims=True)
    return onehot / jnp.maximum(counts, 1.0)


def gnn_reference(a_hat, x, params, pool_mat):
    """Pure-JAX f32 reference (same math, no padding/bf16)."""
    (w1, b1), (w2, b2), (w3, b3), (wfc, bfc) = params

    def prop(h, w, b):
        h = jnp.einsum('bnf,fo->bno', h, w)
        h = jnp.einsum('ij,bjo->bio', a_hat, h) + b
        return jnp.maximum(h, 0.0)

    h = prop(x, w1, b1)
    h = prop(h, w2, b2)
    h = prop(h, w3, b3)
    pooled = jnp.einsum('gj,bjo->bgo', pool_mat, h)
    logits = jnp.einsum('bgo,oc->bgc', pooled, wfc) + bfc
    return jax.nn.log_softmax(logits, axis=-1).reshape(-1, NUM_CLASSES)


if __name__ == "__main__":
    edge_index, batch_vec = build_batch_graph()
    a_hat_f32 = build_a_hat(edge_index, NODES_PER_BATCH)      # [128, 128]
    pool_f32 = build_pool_mat(batch_vec, GRAPHS_PER_BATCH)    # [16, 128]

    key = jax.random.PRNGKey(0)
    x = jax.random.normal(key, (NUM_BATCHES, NODES_PER_BATCH, F_IN), jnp.float32)
    x_pad = jnp.pad(x, ((0, 0), (0, 0), (0, F_PAD - F_IN))).astype(jnp.bfloat16)

    params = make_params(jax.random.PRNGKey(1))
    w_slab, b_slab = pack_params(params)

    # pre-cast grid-invariant MXU operands to bf16 on the host
    out = gnn_forward(a_hat_f32.astype(jnp.bfloat16), x_pad,
                      w_slab.astype(jnp.bfloat16), b_slab,
                      pool_f32.astype(jnp.bfloat16))
    out = jax.block_until_ready(out)

    total_graphs = NUM_BATCHES * GRAPHS_PER_BATCH
    assert out.shape == (total_graphs, NUM_CLASSES)

    # rows of log_softmax must exp-sum to ~1
    row_sums = jnp.sum(jnp.exp(out), axis=1)
    assert bool(jnp.all(jnp.abs(row_sums - 1.0) < 1e-4))

    # compare against pure-JAX f32 reference (bf16 MXU operands -> loose tol)
    ref = gnn_reference(a_hat_f32, x, params, pool_f32)
    max_err = float(jnp.max(jnp.abs(out - ref)))
    assert max_err < 0.1, f"max abs error vs reference: {max_err}"

    print("KERNEL_OK")
</pallas_src>

<mosaic_0001>
module attributes {stable_mosaic.version = 11 : i64} {
  func.func @gnn_kernel(%arg0: i32, %arg1: memref<128x128xbf16, #tpu.memory_space<vmem>>, %arg2: memref<2x128x8xbf16, #tpu.memory_space<vmem>>, %arg3: memref<4x128x128xbf16, #tpu.memory_space<vmem>>, %arg4: memref<4x128xf32, #tpu.memory_space<vmem>>, %arg5: memref<16x128xbf16, #tpu.memory_space<vmem>>, %arg6: memref<2x16x128xf32, #tpu.memory_space<vmem>>) attributes {dimension_semantics = [#tpu.dimension_semantics<parallel>], iteration_bounds = array<i64: 2>, scalar_prefetch = 0 : i64, scratch_operands = 0 : i64, tpu.core_type = #tpu.core_type<tc>, window_params = [{pipeline_mode = #tpu.pipeline_mode<synchronous>, transform_indices = @transform_0, window_bounds = array<i64: 128, 128>}, {transform_indices = @transform_1, window_bounds = array<i64: 2, 128, 8>}, {pipeline_mode = #tpu.pipeline_mode<synchronous>, transform_indices = @transform_2, window_bounds = array<i64: 4, 128, 128>}, {pipeline_mode = #tpu.pipeline_mode<synchronous>, transform_indices = @transform_3, window_bounds = array<i64: 4, 128>}, {pipeline_mode = #tpu.pipeline_mode<synchronous>, transform_indices = @transform_4, window_bounds = array<i64: 16, 128>}, {transform_indices = @transform_5, window_bounds = array<i64: 2, 16, 128>}]} {
    %c0 = arith.constant 0 : index
    %c0_0 = arith.constant 0 : index
    %0 = vector.load %arg1[%c0, %c0_0] : memref<128x128xbf16, #tpu.memory_space<vmem>>, vector<128x128xbf16>
    %c0_1 = arith.constant 0 : index
    %c0_2 = arith.constant 0 : index
    %c0_3 = arith.constant 0 : index
    %1 = vector.load %arg3[%c0_1, %c0_2, %c0_3] : memref<4x128x128xbf16, #tpu.memory_space<vmem>>, vector<1x128x128xbf16>
    %2 = vector.shape_cast %1 : vector<1x128x128xbf16> to vector<128x128xbf16>
    %3 = vector.extract_strided_slice %2 {offsets = [0, 0], sizes = [8, 128], strides = [1, 1]} : vector<128x128xbf16> to vector<8x128xbf16>
    %c1 = arith.constant 1 : index
    %c0_4 = arith.constant 0 : index
    %c0_5 = arith.constant 0 : index
    %4 = vector.load %arg3[%c1, %c0_4, %c0_5] : memref<4x128x128xbf16, #tpu.memory_space<vmem>>, vector<1x128x128xbf16>
    %5 = vector.shape_cast %4 : vector<1x128x128xbf16> to vector<128x128xbf16>
    %c2 = arith.constant 2 : index
    %c0_6 = arith.constant 0 : index
    %c0_7 = arith.constant 0 : index
    %6 = vector.load %arg3[%c2, %c0_6, %c0_7] : memref<4x128x128xbf16, #tpu.memory_space<vmem>>, vector<1x128x128xbf16>
    %7 = vector.shape_cast %6 : vector<1x128x128xbf16> to vector<128x128xbf16>
    %c3 = arith.constant 3 : index
    %c0_8 = arith.constant 0 : index
    %c0_9 = arith.constant 0 : index
    %8 = vector.load %arg3[%c3, %c0_8, %c0_9] : memref<4x128x128xbf16, #tpu.memory_space<vmem>>, vector<1x128x128xbf16>
    %9 = vector.shape_cast %8 : vector<1x128x128xbf16> to vector<128x128xbf16>
    %c0_10 = arith.constant 0 : index
    %c0_11 = arith.constant 0 : index
    %c0_12 = arith.constant 0 : index
    %10 = vector.load %arg2[%c0_10, %c0_11, %c0_12] : memref<2x128x8xbf16, #tpu.memory_space<vmem>>, vector<1x128x8xbf16>
    %11 = vector.shape_cast %10 : vector<1x128x8xbf16> to vector<128x8xbf16>
    %cst = arith.constant dense<0.000000e+00> : vector<128x128xf32>
    %12 = tpu.matmul %11, %3, %cst {dimension_numbers = #tpu.dot_dimension_numbers<[1], [0], [0], [1], [0, 0, 1, 1], [], []>} : vector<128x8xbf16>, vector<8x128xbf16>, vector<128x128xf32> -> vector<128x128xf32>
    %c1_13 = arith.constant 1 : index
    %c0_14 = arith.constant 0 : index
    %c0_15 = arith.constant 0 : index
    %13 = vector.load %arg2[%c1_13, %c0_14, %c0_15] : memref<2x128x8xbf16, #tpu.memory_space<vmem>>, vector<1x128x8xbf16>
    %14 = vector.shape_cast %13 : vector<1x128x8xbf16> to vector<128x8xbf16>
    %cst_16 = arith.constant dense<0.000000e+00> : vector<128x128xf32>
    %15 = tpu.matmul %14, %3, %cst_16 {dimension_numbers = #tpu.dot_dimension_numbers<[1], [0], [0], [1], [0, 0, 1, 1], [], []>} : vector<128x8xbf16>, vector<8x128xbf16>, vector<128x128xf32> -> vector<128x128xf32>
    %16 = arith.truncf %12 : vector<128x128xf32> to vector<128x128xbf16>
    %17 = arith.truncf %15 : vector<128x128xf32> to vector<128x128xbf16>
    %18 = tpu.concatenate %16, %17 in 1 : vector<128x128xbf16>, vector<128x128xbf16> -> vector<128x256xbf16>
    %cst_17 = arith.constant dense<0.000000e+00> : vector<128x256xf32>
    %19 = tpu.matmul %0, %18, %cst_17 {dimension_numbers = #tpu.dot_dimension_numbers<[1], [0], [0], [1], [0, 0, 1, 1], [], []>} : vector<128x128xbf16>, vector<128x256xbf16>, vector<128x256xf32> -> vector<128x256xf32>
    %c0_18 = arith.constant 0 : index
    %c0_19 = arith.constant 0 : index
    %20 = vector.load %arg4[%c0_18, %c0_19] : memref<4x128xf32, #tpu.memory_space<vmem>>, vector<1x128xf32>
    %21 = tpu.concatenate %20, %20 in 1 : vector<1x128xf32>, vector<1x128xf32> -> vector<1x256xf32>
    %22 = vector.broadcast %21 : vector<1x256xf32> to vector<128x256xf32>
    %23 = arith.addf %19, %22 : vector<128x256xf32>
    %cst_20 = arith.constant 0.000000e+00 : f32
    %24 = vector.broadcast %cst_20 : f32 to vector<128x256xf32>
    %25 = arith.maximumf %23, %24 : vector<128x256xf32>
    %26 = arith.truncf %25 : vector<128x256xf32> to vector<128x256xbf16>
    %27 = vector.extract_strided_slice %26 {offsets = [0, 0], sizes = [128, 128], strides = [1, 1]} : vector<128x256xbf16> to vector<128x128xbf16>
    %cst_21 = arith.constant dense<0.000000e+00> : vector<128x128xf32>
    %28 = tpu.matmul %27, %5, %cst_21 {dimension_numbers = #tpu.dot_dimension_numbers<[1], [0], [0], [1], [0, 0, 1, 1], [], []>} : vector<128x128xbf16>, vector<128x128xbf16>, vector<128x128xf32> -> vector<128x128xf32>
    %29 = vector.extract_strided_slice %26 {offsets = [0, 128], sizes = [128, 128], strides = [1, 1]} : vector<128x256xbf16> to vector<128x128xbf16>
    %cst_22 = arith.constant dense<0.000000e+00> : vector<128x128xf32>
    %30 = tpu.matmul %29, %5, %cst_22 {dimension_numbers = #tpu.dot_dimension_numbers<[1], [0], [0], [1], [0, 0, 1, 1], [], []>} : vector<128x128xbf16>, vector<128x128xbf16>, vector<128x128xf32> -> vector<128x128xf32>
    %31 = arith.truncf %28 : vector<128x128xf32> to vector<128x128xbf16>
    %32 = arith.truncf %30 : vector<128x128xf32> to vector<128x128xbf16>
    %33 = tpu.concatenate %31, %32 in 1 : vector<128x128xbf16>, vector<128x128xbf16> -> vector<128x256xbf16>
    %cst_23 = arith.constant dense<0.000000e+00> : vector<128x256xf32>
    %34 = tpu.matmul %0, %33, %cst_23 {dimension_numbers = #tpu.dot_dimension_numbers<[1], [0], [0], [1], [0, 0, 1, 1], [], []>} : vector<128x128xbf16>, vector<128x256xbf16>, vector<128x256xf32> -> vector<128x256xf32>
    %c1_24 = arith.constant 1 : index
    %c0_25 = arith.constant 0 : index
    %35 = vector.load %arg4[%c1_24, %c0_25] : memref<4x128xf32, #tpu.memory_space<vmem>>, vector<1x128xf32>
    %36 = tpu.concatenate %35, %35 in 1 : vector<1x128xf32>, vector<1x128xf32> -> vector<1x256xf32>
    %37 = vector.broadcast %36 : vector<1x256xf32> to vector<128x256xf32>
    %38 = arith.addf %34, %37 : vector<128x256xf32>
    %cst_26 = arith.constant 0.000000e+00 : f32
    %39 = vector.broadcast %cst_26 : f32 to vector<128x256xf32>
    %40 = arith.maximumf %38, %39 : vector<128x256xf32>
    %41 = arith.truncf %40 : vector<128x256xf32> to vector<128x256xbf16>
    %42 = vector.extract_strided_slice %41 {offsets = [0, 0], sizes = [128, 128], strides = [1, 1]} : vector<128x256xbf16> to vector<128x128xbf16>
    %cst_27 = arith.constant dense<0.000000e+00> : vector<128x128xf32>
    %43 = tpu.matmul %42, %7, %cst_27 {dimension_numbers = #tpu.dot_dimension_numbers<[1], [0], [0], [1], [0, 0, 1, 1], [], []>} : vector<128x128xbf16>, vector<128x128xbf16>, vector<128x128xf32> -> vector<128x128xf32>
    %44 = vector.extract_strided_slice %41 {offsets = [0, 128], sizes = [128, 128], strides = [1, 1]} : vector<128x256xbf16> to vector<128x128xbf16>
    %cst_28 = arith.constant dense<0.000000e+00> : vector<128x128xf32>
    %45 = tpu.matmul %44, %7, %cst_28 {dimension_numbers = #tpu.dot_dimension_numbers<[1], [0], [0], [1], [0, 0, 1, 1], [], []>} : vector<128x128xbf16>, vector<128x128xbf16>, vector<128x128xf32> -> vector<128x128xf32>
    %46 = arith.truncf %43 : vector<128x128xf32> to vector<128x128xbf16>
    %47 = arith.truncf %45 : vector<128x128xf32> to vector<128x128xbf16>
    %48 = tpu.concatenate %46, %47 in 1 : vector<128x128xbf16>, vector<128x128xbf16> -> vector<128x256xbf16>
    %cst_29 = arith.constant dense<0.000000e+00> : vector<128x256xf32>
    %49 = tpu.matmul %0, %48, %cst_29 {dimension_numbers = #tpu.dot_dimension_numbers<[1], [0], [0], [1], [0, 0, 1, 1], [], []>} : vector<128x128xbf16>, vector<128x256xbf16>, vector<128x256xf32> -> vector<128x256xf32>
    %c2_30 = arith.constant 2 : index
    %c0_31 = arith.constant 0 : index
    %50 = vector.load %arg4[%c2_30, %c0_31] : memref<4x128xf32, #tpu.memory_space<vmem>>, vector<1x128xf32>
    %51 = tpu.concatenate %50, %50 in 1 : vector<1x128xf32>, vector<1x128xf32> -> vector<1x256xf32>
    %52 = vector.broadcast %51 : vector<1x256xf32> to vector<128x256xf32>
    %53 = arith.addf %49, %52 : vector<128x256xf32>
    %cst_32 = arith.constant 0.000000e+00 : f32
    %54 = vector.broadcast %cst_32 : f32 to vector<128x256xf32>
    %55 = arith.maximumf %53, %54 : vector<128x256xf32>
    %56 = arith.truncf %55 : vector<128x256xf32> to vector<128x256xbf16>
    %c0_33 = arith.constant 0 : index
    %c0_34 = arith.constant 0 : index
    %57 = vector.load %arg5[%c0_33, %c0_34] : memref<16x128xbf16, #tpu.memory_space<vmem>>, vector<16x128xbf16>
    %cst_35 = arith.constant dense<0.000000e+00> : vector<16x256xf32>
    %58 = tpu.matmul %57, %56, %cst_35 {dimension_numbers = #tpu.dot_dimension_numbers<[1], [0], [0], [1], [0, 0, 1, 1], [], []>} : vector<16x128xbf16>, vector<128x256xbf16>, vector<16x256xf32> -> vector<16x256xf32>
    %c3_36 = arith.constant 3 : index
    %c0_37 = arith.constant 0 : index
    %59 = vector.load %arg4[%c3_36, %c0_37] : memref<4x128xf32, #tpu.memory_space<vmem>>, vector<1x128xf32>
    %60 = tpu.iota {dimensions = array<i32: 1>} : vector<16x128xi32>
    %c2_i32 = arith.constant 2 : i32
    %61 = vector.broadcast %c2_i32 : i32 to vector<16x128xi32>
    %62 = arith.cmpi slt, %60, %61 : vector<16x128xi32>
    %63 = vector.extract_strided_slice %58 {offsets = [0, 0], sizes = [16, 128], strides = [1, 1]} : vector<16x256xf32> to vector<16x128xf32>
    %64 = arith.truncf %63 : vector<16x128xf32> to vector<16x128xbf16>
    %cst_38 = arith.constant dense<0.000000e+00> : vector<16x128xf32>
    %65 = tpu.matmul %64, %9, %cst_38 {dimension_numbers = #tpu.dot_dimension_numbers<[1], [0], [0], [1], [0, 0, 1, 1], [], []>} : vector<16x128xbf16>, vector<128x128xbf16>, vector<16x128xf32> -> vector<16x128xf32>
    %66 = vector.broadcast %59 : vector<1x128xf32> to vector<16x128xf32>
    %67 = arith.addf %65, %66 : vector<16x128xf32>
    %cst_39 = arith.constant -1.000000e+30 : f32
    %68 = vector.broadcast %cst_39 : f32 to vector<16x128xf32>
    %69 = arith.select %62, %67, %68 : vector<16x128xi1>, vector<16x128xf32>
    %cst_40 = arith.constant dense<0xFF800000> : vector<16xf32>
    %70 = vector.multi_reduction <maximumf>, %69, %cst_40 [1] : vector<16x128xf32> to vector<16xf32>
    %71 = vector.shape_cast %70 : vector<16xf32> to vector<16x1xf32>
    %72 = vector.broadcast %71 : vector<16x1xf32> to vector<16x128xf32>
    %73 = arith.subf %69, %72 : vector<16x128xf32>
    %74 = math.exp %73 : vector<16x128xf32>
    %cst_41 = arith.constant 0.000000e+00 : f32
    %75 = vector.broadcast %cst_41 : f32 to vector<16x128xf32>
    %76 = arith.select %62, %74, %75 : vector<16x128xi1>, vector<16x128xf32>
    %cst_42 = arith.constant dense<0.000000e+00> : vector<16xf32>
    %77 = vector.multi_reduction <add>, %76, %cst_42 [1] : vector<16x128xf32> to vector<16xf32>
    %78 = vector.shape_cast %77 : vector<16xf32> to vector<16x1xf32>
    %79 = math.log %78 : vector<16x1xf32>
    %80 = vector.broadcast %79 : vector<16x1xf32> to vector<16x128xf32>
    %81 = arith.subf %73, %80 : vector<16x128xf32>
    %c0_43 = arith.constant 0 : index
    %c0_44 = arith.constant 0 : index
    %c0_45 = arith.constant 0 : index
    %82 = vector.load %arg6[%c0_43, %c0_44, %c0_45] : memref<2x16x128xf32, #tpu.memory_space<vmem>>, vector<1x16x128xf32>
    %83 = vector.shape_cast %82 : vector<1x16x128xf32> to vector<16x128xf32>
    %84 = vector.shape_cast %81 : vector<16x128xf32> to vector<1x16x128xf32>
    tpu.vector_store %arg6[%c0_43, %c0_44, %c0_45], %84 {strides = array<i32>} : memref<2x16x128xf32, #tpu.memory_space<vmem>>, vector<1x16x128xf32>,
    %85 = vector.extract_strided_slice %58 {offsets = [0, 128], sizes = [16, 128], strides = [1, 1]} : vector<16x256xf32> to vector<16x128xf32>
    %86 = arith.truncf %85 : vector<16x128xf32> to vector<16x128xbf16>
    %cst_46 = arith.constant dense<0.000000e+00> : vector<16x128xf32>
    %87 = tpu.matmul %86, %9, %cst_46 {dimension_numbers = #tpu.dot_dimension_numbers<[1], [0], [0], [1], [0, 0, 1, 1], [], []>} : vector<16x128xbf16>, vector<128x128xbf16>, vector<16x128xf32> -> vector<16x128xf32>
    %88 = vector.broadcast %59 : vector<1x128xf32> to vector<16x128xf32>
    %89 = arith.addf %87, %88 : vector<16x128xf32>
    %cst_47 = arith.constant -1.000000e+30 : f32
    %90 = vector.broadcast %cst_47 : f32 to vector<16x128xf32>
    %91 = arith.select %62, %89, %90 : vector<16x128xi1>, vector<16x128xf32>
    %cst_48 = arith.constant dense<0xFF800000> : vector<16xf32>
    %92 = vector.multi_reduction <maximumf>, %91, %cst_48 [1] : vector<16x128xf32> to vector<16xf32>
    %93 = vector.shape_cast %92 : vector<16xf32> to vector<16x1xf32>
    %94 = vector.broadcast %93 : vector<16x1xf32> to vector<16x128xf32>
    %95 = arith.subf %91, %94 : vector<16x128xf32>
    %96 = math.exp %95 : vector<16x128xf32>
    %cst_49 = arith.constant 0.000000e+00 : f32
    %97 = vector.broadcast %cst_49 : f32 to vector<16x128xf32>
    %98 = arith.select %62, %96, %97 : vector<16x128xi1>, vector<16x128xf32>
    %cst_50 = arith.constant dense<0.000000e+00> : vector<16xf32>
    %99 = vector.multi_reduction <add>, %98, %cst_50 [1] : vector<16x128xf32> to vector<16xf32>
    %100 = vector.shape_cast %99 : vector<16xf32> to vector<16x1xf32>
    %101 = math.log %100 : vector<16x1xf32>
    %102 = vector.broadcast %101 : vector<16x1xf32> to vector<16x128xf32>
    %103 = arith.subf %95, %102 : vector<16x128xf32>
    %c1_51 = arith.constant 1 : index
    %c0_52 = arith.constant 0 : index
    %c0_53 = arith.constant 0 : index
    %104 = vector.load %arg6[%c1_51, %c0_52, %c0_53] : memref<2x16x128xf32, #tpu.memory_space<vmem>>, vector<1x16x128xf32>
    %105 = vector.shape_cast %104 : vector<1x16x128xf32> to vector<16x128xf32>
    %106 = vector.shape_cast %103 : vector<16x128xf32> to vector<1x16x128xf32>
    tpu.vector_store %arg6[%c1_51, %c0_52, %c0_53], %106 {strides = array<i32>} : memref<2x16x128xf32, #tpu.memory_space<vmem>>, vector<1x16x128xf32>,
    return
  }
  func.func @transform_0(%arg0: i32) -> (i32, i32) {
    %c0_i32 = arith.constant 0 : i32
    %c0_i32_0 = arith.constant 0 : i32
    %c0_i32_1 = arith.constant 0 : i32
    return %c0_i32, %c0_i32_0 : i32, i32
  }
  func.func @transform_1(%arg0: i32) -> (i32, i32, i32) {
    %c0_i32 = arith.constant 0 : i32
    %c0_i32_0 = arith.constant 0 : i32
    %c0_i32_1 = arith.constant 0 : i32
    return %arg0, %c0_i32, %c0_i32_0 : i32, i32, i32
  }
  func.func @transform_2(%arg0: i32) -> (i32, i32, i32) {
    %c0_i32 = arith.constant 0 : i32
    %c0_i32_0 = arith.constant 0 : i32
    %c0_i32_1 = arith.constant 0 : i32
    %c0_i32_2 = arith.constant 0 : i32
    return %c0_i32, %c0_i32_0, %c0_i32_1 : i32, i32, i32
  }
  func.func @transform_3(%arg0: i32) -> (i32, i32) {
    %c0_i32 = arith.constant 0 : i32
    %c0_i32_0 = arith.constant 0 : i32
    %c0_i32_1 = arith.constant 0 : i32
    return %c0_i32, %c0_i32_0 : i32, i32
  }
  func.func @transform_4(%arg0: i32) -> (i32, i32) {
    %c0_i32 = arith.constant 0 : i32
    %c0_i32_0 = arith.constant 0 : i32
    %c0_i32_1 = arith.constant 0 : i32
    return %c0_i32, %c0_i32_0 : i32, i32
  }
  func.func @transform_5(%arg0: i32) -> (i32, i32, i32) {
    %c0_i32 = arith.constant 0 : i32
    %c0_i32_0 = arith.constant 0 : i32
    %c0_i32_1 = arith.constant 0 : i32
    return %arg0, %c0_i32, %c0_i32_0 : i32, i32, i32
  }
}

</mosaic_0001>

<llo_original>
// kernel: tpu_custom_call.1
$region0: #{tpu_custom_call.1}
  #allocation0 [shape = 'u32[]', space=smem, size = 0x4, offset = 0x4, fixed_abs, tag = 'smem constant byte address 0x4 - core index']
  #allocation1 [shape = 'u32[72,128]{1,0:T(1,128)}', space=vmem, size = 0x9000, scoped, tag = 'internal scratch']
  %s0 = inlined_call_operand.hbm [shape: bf16[128,128], index: 0, kind: input, shape index: {}]
  %s1 = inlined_call_operand.vmem [shape: bf16[4,128,8], index: 1, kind: input, shape index: {}]
  %s2 = inlined_call_operand.vmem [shape: bf16[4,128,128], index: 2, kind: input, shape index: {}]
  %s3 = inlined_call_operand.vmem [shape: f32[4,128], index: 3, kind: input, shape index: {}]
  %s4 = inlined_call_operand.vmem [shape: bf16[16,128], index: 4, kind: input, shape index: {}]
  %s5 = inlined_call_operand.hbm [shape: f32[4,16,128], index: 5, kind: output, shape index: {}]
  %s6 = sld [smem:[#allocation0]]
  $region57: #{tpu_custom_call.1} parent=0
    _
  %s8 = ssub.s32 1, %s6
  %s9 = scalar_select 0, %s8, %s6
  $region1: #{tpu_custom_call.1} parent=0
    #allocation2 [shape = 'u8[32768]{0}', space=vmem, size = 0x8000, scoped, tag = 'input window, operand 0, single buffered']
    #allocation3 [shape = 's32[2]{0}', space=sflag, size = 0x8, scoped, tag = 'scoped memory for tpu_custom_call.1']
    #allocation4 [shape = 's32[2]{0}', space=sflag, size = 0x8, scoped, tag = 'scoped memory for tpu_custom_call.1']
    #allocation5 [shape = 'u8[32768]{0}', space=vmem, size = 0x8000, scoped, tag = 'output window, operand 0']
    %10 = vsyncpa [#allocation3], 0
    %11 = vsyncpa [#allocation4], 0
    %s12 = scalar_lea.sflag [#allocation4], 1
    %13 = vsyncpa %s12, 0
    loop: start=0, step=1, limit=4
    $region2: #{tpu_custom_call.1} parent=1 // loop_pre_header
      _
    $region3: #{tpu_custom_call.1} parent=1 // loop_header
      %s15 = sphi 0, %s19
      %p16 = scmp.ge.s32.totalorder %s15, 4
      %s23 = sphi 0, %s23
      %s25 = sphi 0, %s23
      %s26 = sphi 0, %s25
      %s40 = sphi 0, %s26
      %s46 = sphi 0, %s48
      %s49 = sphi 0, %s46
      %s50 = sphi 0, %s49
      %s66 = sphi 0, %s50
      %s70 = sphi 0, %s70
      %s72 = sphi 0, %s70
      %s73 = sphi 0, %s72
      %s87 = sphi 0, %s73
      %s91 = sphi 0, %s91
      %s93 = sphi 0, %s91
      %s94 = sphi 0, %s93
      %s108 = sphi 0, %s94
      %s112 = sphi 0, %s112
      %s114 = sphi 0, %s112
      %s115 = sphi 0, %s114
      %s129 = sphi 0, %s115
      %s135 = sphi 0, %s137
      %s138 = sphi 0, %s135
      %s139 = sphi 0, %s138
      %s155 = sphi 0, %s139
    $region4: #{tpu_custom_call.1} parent=1 // loop_header_branch
      %18 = sbr.rel (%p16) target = $region8
    $region5: #{tpu_custom_call.1} parent=1 // loop_body
      %s20 = ssub.s32 %s15, 1
      %s21 = ssub.s32 %s15, 2
      %s22 = sadd.s32 %s15, 1
      %s24 = sadd.s32 %s23, 1
      %p27 = scmp.eq.s32.totalorder %s15, 1
      %p28 = scmp.ne.s32.totalorder %s23, %s25
      %p29 = scmp.eq.s32.totalorder %s15, 0
      %p30 = por %p28, %p29
      %p31 = scmp.ne.s32.totalorder %s23, %s25
      %p32 = scmp.eq.s32.totalorder %s20, 1
      %p33 = por %p31, %p32
      %p34 = scmp.ne.s32.totalorder %s25, %s26
      %p35 = scmp.eq.s32.totalorder %s20, 0
      %p36 = por %p34, %p35
      %p37 = scmp.ne.s32.totalorder %s25, %s26
      %p38 = scmp.eq.s32.totalorder %s21, 1
      %p39 = por %p37, %p38
      %p41 = scmp.ne.s32.totalorder %s26, %s40
      %p42 = scmp.eq.s32.totalorder %s21, 0
      %p43 = por %p41, %p42
      %s44 = ssub.s32 %s15, %s22
      %p45 = scmp.eq.s32.totalorder %s44, 0
      %s47 = sadd.s32 %s46, 1
      %s48 = scalar_select %p45, %s46, %s47
      %p51 = pneg %p45
      %p52 = scmp.eq.s32.totalorder %s15, 1
      %p53 = por %p51, %p52
      %p54 = scmp.ne.s32.totalorder %s46, %s49
      %p55 = scmp.eq.s32.totalorder %s15, 0
      %p56 = por %p54, %p55
      %p57 = scmp.ne.s32.totalorder %s46, %s49
      %p58 = scmp.eq.s32.totalorder %s20, 1
      %p59 = por %p57, %p58
      %p60 = scmp.ne.s32.totalorder %s49, %s50
      %p61 = scmp.eq.s32.totalorder %s20, 0
      %p62 = por %p60, %p61
      %p63 = scmp.ne.s32.totalorder %s49, %s50
      %p64 = scmp.eq.s32.totalorder %s21, 1
      %p65 = por %p63, %p64
      %p67 = scmp.ne.s32.totalorder %s50, %s66
      %p68 = scmp.eq.s32.totalorder %s21, 0
      %p69 = por %p67, %p68
      %s71 = sadd.s32 %s70, 1
      %p74 = scmp.eq.s32.totalorder %s15, 1
      %p75 = scmp.ne.s32.totalorder %s70, %s72
      %p76 = scmp.eq.s32.totalorder %s15, 0
      %p77 = por %p75, %p76
      %p78 = scmp.ne.s32.totalorder %s70, %s72
      %p79 = scmp.eq.s32.totalorder %s20, 1
      %p80 = por %p78, %p79
      %p81 = scmp.ne.s32.totalorder %s72, %s73
      %p82 = scmp.eq.s32.totalorder %s20, 0
      %p83 = por %p81, %p82
      %p84 = scmp.ne.s32.totalorder %s72, %s73
      %p85 = scmp.eq.s32.totalorder %s21, 1
      %p86 = por %p84, %p85
      %p88 = scmp.ne.s32.totalorder %s73, %s87
      %p89 = scmp.eq.s32.totalorder %s21, 0
      %p90 = por %p88, %p89
      %s92 = sadd.s32 %s91, 1
      %p95 = scmp.eq.s32.totalorder %s15, 1
      %p96 = scmp.ne.s32.totalorder %s91, %s93
      %p97 = scmp.eq.s32.totalorder %s15, 0
      %p98 = por %p96, %p97
      %p99 = scmp.ne.s32.totalorder %s91, %s93
      %p100 = scmp.eq.s32.totalorder %s20, 1
      %p101 = por %p99, %p100
      %p102 = scmp.ne.s32.totalorder %s93, %s94
      %p103 = scmp.eq.s32.totalorder %s20, 0
      %p104 = por %p102, %p103
      %p105 = scmp.ne.s32.totalorder %s93, %s94
      %p106 = scmp.eq.s32.totalorder %s21, 1
      %p107 = por %p105, %p106
      %p109 = scmp.ne.s32.totalorder %s94, %s108
      %p110 = scmp.eq.s32.totalorder %s21, 0
      %p111 = por %p109, %p110
      %s113 = sadd.s32 %s112, 1
      %p116 = scmp.eq.s32.totalorder %s15, 1
      %p117 = scmp.ne.s32.totalorder %s112, %s114
      %p118 = scmp.eq.s32.totalorder %s15, 0
      %p119 = por %p117, %p118
      %p120 = scmp.ne.s32.totalorder %s112, %s114
      %p121 = scmp.eq.s32.totalorder %s20, 1
      %p122 = por %p120, %p121
      %p123 = scmp.ne.s32.totalorder %s114, %s115
      %p124 = scmp.eq.s32.totalorder %s20, 0
      %p125 = por %p123, %p124
      %p126 = scmp.ne.s32.totalorder %s114, %s115
      %p127 = scmp.eq.s32.totalorder %s21, 1
      %p128 = por %p126, %p127
      %p130 = scmp.ne.s32.totalorder %s115, %s129
      %p131 = scmp.eq.s32.totalorder %s21, 0
      %p132 = por %p130, %p131
      %s133 = ssub.s32 %s15, %s22
      %p134 = scmp.eq.s32.totalorder %s133, 0
      %s136 = sadd.s32 %s135, 1
      %s137 = scalar_select %p134, %s135, %s136
      %p140 = pneg %p134
      %p141 = scmp.eq.s32.totalorder %s15, 1
      %p142 = por %p140, %p141
      %p143 = scmp.ne.s32.totalorder %s135, %s138
      %p144 = scmp.eq.s32.totalorder %s15, 0
      %p145 = por %p143, %p144
      %p146 = scmp.ne.s32.totalorder %s135, %s138
      %p147 = scmp.eq.s32.totalorder %s20, 1
      %p148 = por %p146, %p147
      %p149 = scmp.ne.s32.totalorder %s138, %s139
      %p150 = scmp.eq.s32.totalorder %s20, 0
      %p151 = por %p149, %p150
      %p152 = scmp.ne.s32.totalorder %s138, %s139
      %p153 = scmp.eq.s32.totalorder %s21, 1
      %p154 = por %p152, %p153
      %p156 = scmp.ne.s32.totalorder %s139, %s155
      %p157 = scmp.eq.s32.totalorder %s21, 0
      %p158 = por %p156, %p157
      %p159 = scmp.le.s32.totalorder 1, %s15
      %p160 = scmp.lt.s32.totalorder %s15, 3
      %p161 = pnand %p159, %p160
      %p162 = pneg %p161
      // Predicated region
      $region9: #{tpu_custom_call.1} parent=5 // pred_check
        _
      $region10: #{tpu_custom_call.1} parent=5 // pred_check_branch
        %164 = sbr.rel (%p161) target = $region12
      $region11: #{tpu_custom_call.1} parent=5 // pred_region
        %s165 = ssub.s32 %s15, 1
        // Predicated region
        $region13: #{tpu_custom_call.1} parent=11 // pred_check
          %p166 = pneg %p36
        $region14: #{tpu_custom_call.1} parent=11 // pred_check_branch
          %168 = sbr.rel (%p166) target = $region16
        $region15: #{tpu_custom_call.1} parent=11 // pred_region
          %170 = vsyncadd [#allocation3], 0
          %s171 = sshll.u32 %s0, 4
          %s172 = int_to_ptr.hbm [resolvable:$true] %s171
          %s173 = sshll.u32 [#allocation2], 4
          %s174 = int_to_ptr.vmem [resolvable:$true] %s173
          %179 = dma.hbm_to_vmem [thread:$0]  %s172, 1024, %s174, [#allocation3], 64, 64, 4
        $region16: #{tpu_custom_call.1} parent=11 // pred_fallthru
          _
        // Predicated region
        $region17: #{tpu_custom_call.1} parent=11 // pred_check
          %p180 = pneg %p83
        $region18: #{tpu_custom_call.1} parent=11 // pred_check_branch
          %182 = sbr.rel (%p180) target = $region20
        $region19: #{tpu_custom_call.1} parent=11 // pred_region
          _
        $region20: #{tpu_custom_call.1} parent=11 // pred_fallthru
          _
        // Predicated region
        $region21: #{tpu_custom_call.1} parent=11 // pred_check
          %p183 = pneg %p104
        $region22: #{tpu_custom_call.1} parent=11 // pred_check_branch
          %185 = sbr.rel (%p183) target = $region24
        $region23: #{tpu_custom_call.1} parent=11 // pred_region
          _
        $region24: #{tpu_custom_call.1} parent=11 // pred_fallthru
          _
        // Predicated region
        $region25: #{tpu_custom_call.1} parent=11 // pred_check
          %p186 = pneg %p125
        $region26: #{tpu_custom_call.1} parent=11 // pred_check_branch
          %188 = sbr.rel (%p186) target = $region28
        $region27: #{tpu_custom_call.1} parent=11 // pred_region
          _
        $region28: #{tpu_custom_call.1} parent=11 // pred_fallthru
          _
      $region12: #{tpu_custom_call.1} parent=5 // pred_fallthru
        _
      %p189 = scmp.lt.s32.totalorder %s15, 2
      // Predicated region
      $region29: #{tpu_custom_call.1} parent=5 // pred_check
        %p190 = pneg %p189
      $region30: #{tpu_custom_call.1} parent=5 // pred_check_branch
        %192 = sbr.rel (%p190) target = $region32
      $region31: #{tpu_custom_call.1} parent=5 // pred_region
        // Predicated region
        $region33: #{tpu_custom_call.1} parent=31 // pred_check
          %p193 = pneg %p56
        $region34: #{tpu_custom_call.1} parent=31 // pred_check_branch
          %195 = sbr.rel (%p193) target = $region36
        $region35: #{tpu_custom_call.1} parent=31 // pred_region
          %s196 = smul.u32 2, %s15
          %p197 = scmp.lt.s32.totalorder %s196, 3
          %s198 = scalar_select %p197, %s196, 3
          %s199 = smul.addr %s198, 16
          %s200 = smul.addr %s199, 4
          %s201 = scalar_lea.vmem %s1, %s200
          %s202 = smul.u32 2, %s15
        $region36: #{tpu_custom_call.1} parent=31 // pred_fallthru
          _
      $region32: #{tpu_custom_call.1} parent=5 // pred_fallthru
        _
      %p203 = scmp.le.s32.totalorder 1, %s15
      %p204 = scmp.lt.s32.totalorder %s15, 3
      %p205 = pnand %p203, %p204
      %p206 = pneg %p205
      // Predicated region
      $region37: #{tpu_custom_call.1} parent=5 // pred_check
        _
      $region38: #{tpu_custom_call.1} parent=5 // pred_check_branch
        %208 = sbr.rel (%p205) target = $region40
      $region39: #{tpu_custom_call.1} parent=5 // pred_region
        %s209 = ssub.s32 %s15, 1
        // Predicated region
        $region41: #{tpu_custom_call.1} parent=39 // pred_check
          %p210 = pneg %p36
        $region42: #{tpu_custom_call.1} parent=39 // pred_check_branch
          %212 = sbr.rel (%p210) target = $region44
        $region43: #{tpu_custom_call.1} parent=39 // pred_region
          %214 = dma.done [#allocation3], 1024
        $region44: #{tpu_custom_call.1} parent=39 // pred_fallthru
          _
        %p215 = pneg %p36
        %p216 = pneg %p33
        %s217 = smul.u32 2, %s20
        %p218 = scmp.lt.s32.totalorder %s217, 3
        %s219 = scalar_select %p218, %s217, 3
        %s220 = smul.addr %s219, 16
        %s221 = smul.addr %s220, 4
        %s222 = scalar_lea.vmem %s1, %s221
        %p223 = pneg %p62
        %p224 = pneg %p59
        %p225 = pneg %p83
        %p226 = pneg %p80
        %p227 = pneg %p104
        %p228 = pneg %p101
        %p229 = pneg %p125
        %p230 = pneg %p122
        %p231 = pneg %p151
        %p232 = pneg %p148
        %s233 = sand.u32 %s138, 1
        %s234 = scalar_lea.sflag [#allocation4], %s233
        %s235 = sand.u32 %s138, 1
        %s236 = smul.addr %s235, 32
        %s237 = scalar_lea.vmem [#allocation5], %s236
        %s238 = smul.u32 2, %s20
        %p239 = scmp.lt.s32.totalorder %s238, 3
        %s240 = scalar_select %p239, %s238, 3
        %s241 = smul.addr %s240, 16
        %s242 = smul.addr %s241, 4
        %s243 = scalar_lea.vmem %s1, %s242
        %s244 = smul.u32 2, %s20
        %s245 = smul.u32 2, %s20
        %v247 = vld [vmem:[#allocation2] sm:$0xf]
        %v248 = vld [vmem:[#allocation2 + $0x4] sm:$0xf]
        %v249 = vld [vmem:[#allocation2 + $0x8] sm:$0xf]
        %v250 = vld [vmem:[#allocation2 + $0xc] sm:$0xf]
        %v251 = vld [vmem:[#allocation2 + $0x10] sm:$0xf]
        %v252 = vld [vmem:[#allocation2 + $0x14] sm:$0xf]
        %v253 = vld [vmem:[#allocation2 + $0x18] sm:$0xf]
        %v254 = vld [vmem:[#allocation2 + $0x1c] sm:$0xf]
        %v255 = vld [vmem:[#allocation2 + $0x20] sm:$0xf]
        %v256 = vld [vmem:[#allocation2 + $0x24] sm:$0xf]
        %v257 = vld [vmem:[#allocation2 + $0x28] sm:$0xf]
        %v258 = vld [vmem:[#allocation2 + $0x2c] sm:$0xf]
        %v259 = vld [vmem:[#allocation2 + $0x30] sm:$0xf]
        %v260 = vld [vmem:[#allocation2 + $0x34] sm:$0xf]
        %v261 = vld [vmem:[#allocation2 + $0x38] sm:$0xf]
        %v262 = vld [vmem:[#allocation2 + $0x3c] sm:$0xf]
        %v263 = vld [vmem:[%s2] sm:$0xf]
        %s264 = scalar_lea.vmem %s2, 64
        %v265 = vld [vmem:[%s264] sm:$0xf]
        %v266 = vld [vmem:[%s264 + $0x4] sm:$0xf]
        %v267 = vld [vmem:[%s264 + $0x8] sm:$0xf]
        %v268 = vld [vmem:[%s264 + $0xc] sm:$0xf]
        %v269 = vld [vmem:[%s264 + $0x10] sm:$0xf]
        %v270 = vld [vmem:[%s264 + $0x14] sm:$0xf]
        %v271 = vld [vmem:[%s264 + $0x18] sm:$0xf]
        %v272 = vld [vmem:[%s264 + $0x1c] sm:$0xf]
        %v273 = vld [vmem:[%s264 + $0x20] sm:$0xf]
        %v274 = vld [vmem:[%s264 + $0x24] sm:$0xf]
        %v275 = vld [vmem:[%s264 + $0x28] sm:$0xf]
        %v276 = vld [vmem:[%s264 + $0x2c] sm:$0xf]
        %v277 = vld [vmem:[%s264 + $0x30] sm:$0xf]
        %v278 = vld [vmem:[%s264 + $0x34] sm:$0xf]
        %v279 = vld [vmem:[%s264 + $0x38] sm:$0xf]
        %v280 = vld [vmem:[%s264 + $0x3c] sm:$0xf]
        %s281 = scalar_lea.vmem %s2, 128
        %v282 = vld [vmem:[%s281] sm:$0xf]
        %v283 = vld [vmem:[%s281 + $0x4] sm:$0xf]
        %v284 = vld [vmem:[%s281 + $0x8] sm:$0xf]
        %v285 = vld [vmem:[%s281 + $0xc] sm:$0xf]
        %v286 = vld [vmem:[%s281 + $0x10] sm:$0xf]
        %v287 = vld [vmem:[%s281 + $0x14] sm:$0xf]
        %v288 = vld [vmem:[%s281 + $0x18] sm:$0xf]
        %v289 = vld [vmem:[%s281 + $0x1c] sm:$0xf]
        %v290 = vld [vmem:[%s281 + $0x20] sm:$0xf]
        %v291 = vld [vmem:[%s281 + $0x24] sm:$0xf]
        %v292 = vld [vmem:[%s281 + $0x28] sm:$0xf]
        %v293 = vld [vmem:[%s281 + $0x2c] sm:$0xf]
        %v294 = vld [vmem:[%s281 + $0x30] sm:$0xf]
        %v295 = vld [vmem:[%s281 + $0x34] sm:$0xf]
        %v296 = vld [vmem:[%s281 + $0x38] sm:$0xf]
        %v297 = vld [vmem:[%s281 + $0x3c] sm:$0xf]
        %s298 = scalar_lea.vmem %s2, 192
        %v299 = vld [vmem:[%s298] sm:$0xf]
        %v300 = vld [vmem:[%s298 + $0x4] sm:$0xf]
        %v301 = vld [vmem:[%s298 + $0x8] sm:$0xf]
        %v302 = vld [vmem:[%s298 + $0xc] sm:$0xf]
        %v303 = vld [vmem:[%s298 + $0x10] sm:$0xf]
        %v304 = vld [vmem:[%s298 + $0x14] sm:$0xf]
        %v305 = vld [vmem:[%s298 + $0x18] sm:$0xf]
        %v306 = vld [vmem:[%s298 + $0x1c] sm:$0xf]
        %v307 = vld [vmem:[%s298 + $0x20] sm:$0xf]
        %v308 = vld [vmem:[%s298 + $0x24] sm:$0xf]
        %v309 = vld [vmem:[%s298 + $0x28] sm:$0xf]
        %v310 = vld [vmem:[%s298 + $0x2c] sm:$0xf]
        %v311 = vld [vmem:[%s298 + $0x30] sm:$0xf]
        %v312 = vld [vmem:[%s298 + $0x34] sm:$0xf]
        %v313 = vld [vmem:[%s298 + $0x38] sm:$0xf]
        %v314 = vld [vmem:[%s298 + $0x3c] sm:$0xf]
        %v315 = vld [vmem:[%s243] sm:$0xf]
        %v316 = vld [vmem:[%s243 + $0x4] sm:$0xf]
        %v317 = vld [vmem:[%s243 + $0x8] sm:$0xf]
        %v318 = vld [vmem:[%s243 + $0xc] sm:$0xf]
        %v319 = vld [vmem:[%s243 + $0x10] sm:$0xf]
        %v320 = vld [vmem:[%s243 + $0x14] sm:$0xf]
        %v321 = vld [vmem:[%s243 + $0x18] sm:$0xf]
        %v322 = vld [vmem:[%s243 + $0x1c] sm:$0xf]
        %v323 = vld [vmem:[%s243 + $0x20] sm:$0xf]
        %v324 = vld [vmem:[%s243 + $0x24] sm:$0xf]
        %v325 = vld [vmem:[%s243 + $0x28] sm:$0xf]
        %v326 = vld [vmem:[%s243 + $0x2c] sm:$0xf]
        %v327 = vld [vmem:[%s243 + $0x30] sm:$0xf]
        %v328 = vld [vmem:[%s243 + $0x34] sm:$0xf]
        %v329 = vld [vmem:[%s243 + $0x38] sm:$0xf]
        %v330 = vld [vmem:[%s243 + $0x3c] sm:$0xf]
        %v347 = vunpack.c.l.b16 %v315
        %v348 = vunpack.c.l.b16 %v316
        %v349 = vunpack.c.l.b16 %v317
        %v350 = vunpack.c.l.b16 %v318
        %v351 = vunpack.c.l.b16 %v319
        %v352 = vunpack.c.l.b16 %v320
        %v353 = vunpack.c.l.b16 %v321
        %v354 = vunpack.c.l.b16 %v322
        %v355 = vunpack.c.l.b16 %v323
        %v356 = vunpack.c.l.b16 %v324
        %v357 = vunpack.c.l.b16 %v325
        %v358 = vunpack.c.l.b16 %v326
        %v359 = vunpack.c.l.b16 %v327
        %v360 = vunpack.c.l.b16 %v328
        %v361 = vunpack.c.l.b16 %v329
        %v362 = vunpack.c.l.b16 %v330
        %v363 = vpack.c.b16 %v348, %v347
        %v364 = vpack.c.b16 %v350, %v349
        %v365 = vpack.c.b16 %v352, %v351
        %v366 = vpack.c.b16 %v354, %v353
        %v367 = vpack.c.b16 %v356, %v355
        %v368 = vpack.c.b16 %v358, %v357
        %v369 = vpack.c.b16 %v360, %v359
        %v370 = vpack.c.b16 %v362, %v361
        %vm371 = vcmask 64512
        %v373 = vsel %vm371, %v363, 0
        %v376 = vsel %vm371, %v364, 0
        %v379 = vsel %vm371, %v365, 0
        %v382 = vsel %vm371, %v366, 0
        %v385 = vsel %vm371, %v367, 0
        %v388 = vsel %vm371, %v368, 0
        %v391 = vsel %vm371, %v369, 0
        %v394 = vsel %vm371, %v370, 0
        %vm396 = vcmask 1043456
        %v398 = vsel %vm396, %v263, 0
        %400 = vmatpush.bf16.msra.mxu0 0
        %401 = vmatpush.bf16.msra.mxu0 0
        %402 = vmatpush.bf16.msra.mxu0 0
        %403 = vmatpush.bf16.msra.mxu0 0
        %404 = vmatpush.bf16.msra.mxu0 0
        %405 = vmatpush.bf16.msra.mxu0 0
        %406 = vmatpush.bf16.msra.mxu0 0
        %407 = vmatpush.bf16.msra.mxu0 %v398
        %408 = vmatmul.bf16.gmra.mxu0 %v373
        %v409 = vpop.f32.mrf.mxu0
        %v410 = vadd.f32 0.0, %v409
        %v411 = vpop.f32.mrf.mxu0
        %v412 = vadd.f32 0.0, %v411
        %413 = vmatmul.bf16.gmra.mxu0 %v376
        %v414 = vpop.f32.mrf.mxu0
        %v415 = vadd.f32 0.0, %v414
        %v416 = vpop.f32.mrf.mxu0
        %v417 = vadd.f32 0.0, %v416
        %418 = vmatmul.bf16.gmra.mxu0 %v379
        %v419 = vpop.f32.mrf.mxu0
        %v420 = vadd.f32 0.0, %v419
        %v421 = vpop.f32.mrf.mxu0
        %v422 = vadd.f32 0.0, %v421
        %423 = vmatmul.bf16.gmra.mxu0 %v382
        %v424 = vpop.f32.mrf.mxu0
        %v425 = vadd.f32 0.0, %v424
        %v426 = vpop.f32.mrf.mxu0
        %v427 = vadd.f32 0.0, %v426
        %428 = vmatmul.bf16.gmra.mxu0 %v385
        %v429 = vpop.f32.mrf.mxu0
        %v430 = vadd.f32 0.0, %v429
        %v431 = vpop.f32.mrf.mxu0
        %v432 = vadd.f32 0.0, %v431
        %433 = vmatmul.bf16.gmra.mxu0 %v388
        %v434 = vpop.f32.mrf.mxu0
        %v435 = vadd.f32 0.0, %v434
        %v436 = vpop.f32.mrf.mxu0
        %v437 = vadd.f32 0.0, %v436
        %438 = vmatmul.bf16.gmra.mxu0 %v391
        %v439 = vpop.f32.mrf.mxu0
        %v440 = vadd.f32 0.0, %v439
        %v441 = vpop.f32.mrf.mxu0
        %v442 = vadd.f32 0.0, %v441
        %443 = vmatmul.bf16.gmra.mxu0 %v394
        %v444 = vpop.f32.mrf.mxu0
        %v445 = vadd.f32 0.0, %v444
        %v446 = vpop.f32.mrf.mxu0
        %v447 = vadd.f32 0.0, %v446
        %448 = vdwg.mxu0
        %s449 = scalar_lea.vmem %s243, 64
        %v450 = vld [vmem:[%s449] sm:$0xf]
        %v451 = vld [vmem:[%s449 + $0x4] sm:$0xf]
        %v452 = vld [vmem:[%s449 + $0x8] sm:$0xf]
        %v453 = vld [vmem:[%s449 + $0xc] sm:$0xf]
        %v454 = vld [vmem:[%s449 + $0x10] sm:$0xf]
        %v455 = vld [vmem:[%s449 + $0x14] sm:$0xf]
        %v456 = vld [vmem:[%s449 + $0x18] sm:$0xf]
        %v457 = vld [vmem:[%s449 + $0x1c] sm:$0xf]
        %v458 = vld [vmem:[%s449 + $0x20] sm:$0xf]
        %v459 = vld [vmem:[%s449 + $0x24] sm:$0xf]
        %v460 = vld [vmem:[%s449 + $0x28] sm:$0xf]
        %v461 = vld [vmem:[%s449 + $0x2c] sm:$0xf]
        %v462 = vld [vmem:[%s449 + $0x30] sm:$0xf]
        %v463 = vld [vmem:[%s449 + $0x34] sm:$0xf]
        %v464 = vld [vmem:[%s449 + $0x38] sm:$0xf]
        %v465 = vld [vmem:[%s449 + $0x3c] sm:$0xf]
        %v482 = vunpack.c.l.b16 %v450
        %v483 = vunpack.c.l.b16 %v451
        %v484 = vunpack.c.l.b16 %v452
        %v485 = vunpack.c.l.b16 %v453
        %v486 = vunpack.c.l.b16 %v454
        %v487 = vunpack.c.l.b16 %v455
        %v488 = vunpack.c.l.b16 %v456
        %v489 = vunpack.c.l.b16 %v457
        %v490 = vunpack.c.l.b16 %v458
        %v491 = vunpack.c.l.b16 %v459
        %v492 = vunpack.c.l.b16 %v460
        %v493 = vunpack.c.l.b16 %v461
        %v494 = vunpack.c.l.b16 %v462
        %v495 = vunpack.c.l.b16 %v463
        %v496 = vunpack.c.l.b16 %v464
        %v497 = vunpack.c.l.b16 %v465
        %v498 = vpack.c.b16 %v483, %v482
        %v499 = vpack.c.b16 %v485, %v484
        %v500 = vpack.c.b16 %v487, %v486
        %v501 = vpack.c.b16 %v489, %v488
        %v502 = vpack.c.b16 %v491, %v490
        %v503 = vpack.c.b16 %v493, %v492
        %v504 = vpack.c.b16 %v495, %v494
        %v505 = vpack.c.b16 %v497, %v496
        %v507 = vsel %vm371, %v498, 0
        %v510 = vsel %vm371, %v499, 0
        %v513 = vsel %vm371, %v500, 0
        %v516 = vsel %vm371, %v501, 0
        %v519 = vsel %vm371, %v502, 0
        %v522 = vsel %vm371, %v503, 0
        %v525 = vsel %vm371, %v504, 0
        %v528 = vsel %vm371, %v505, 0
        %530 = vmatpush.bf16.msra.mxu0 0
        %531 = vmatpush.bf16.msra.mxu0 0
        %532 = vmatpush.bf16.msra.mxu0 0
        %533 = vmatpush.bf16.msra.mxu0 0
        %534 = vmatpush.bf16.msra.mxu0 0
        %535 = vmatpush.bf16.msra.mxu0 0
        %536 = vmatpush.bf16.msra.mxu0 0
        %537 = vmatpush.bf16.msra.mxu0 %v398
        %538 = vmatmul.bf16.gmra.mxu0 %v507
        %v539 = vpop.f32.mrf.mxu0
        %v540 = vadd.f32 0.0, %v539
        %v541 = vpop.f32.mrf.mxu0
        %v542 = vadd.f32 0.0, %v541
        %543 = vmatmul.bf16.gmra.mxu0 %v510
        %v544 = vpop.f32.mrf.mxu0
        %v545 = vadd.f32 0.0, %v544
        %v546 = vpop.f32.mrf.mxu0
        %v547 = vadd.f32 0.0, %v546
        %548 = vmatmul.bf16.gmra.mxu0 %v513
        %v549 = vpop.f32.mrf.mxu0
        %v550 = vadd.f32 0.0, %v549
        %v551 = vpop.f32.mrf.mxu0
        %v552 = vadd.f32 0.0, %v551
        %553 = vmatmul.bf16.gmra.mxu0 %v516
        %v554 = vpop.f32.mrf.mxu0
        %v555 = vadd.f32 0.0, %v554
        %v556 = vpop.f32.mrf.mxu0
        %v557 = vadd.f32 0.0, %v556
        %558 = vmatmul.bf16.gmra.mxu0 %v519
        %v559 = vpop.f32.mrf.mxu0
        %v560 = vadd.f32 0.0, %v559
        %v561 = vpop.f32.mrf.mxu0
        %v562 = vadd.f32 0.0, %v561
        %563 = vmatmul.bf16.gmra.mxu0 %v522
        %v564 = vpop.f32.mrf.mxu0
        %v565 = vadd.f32 0.0, %v564
        %v566 = vpop.f32.mrf.mxu0
        %v567 = vadd.f32 0.0, %v566
        %568 = vmatmul.bf16.gmra.mxu0 %v525
        %v569 = vpop.f32.mrf.mxu0
        %v570 = vadd.f32 0.0, %v569
        %v571 = vpop.f32.mrf.mxu0
        %v572 = vadd.f32 0.0, %v571
        %573 = vmatmul.bf16.gmra.mxu0 %v528
        %v574 = vpop.f32.mrf.mxu0
        %v575 = vadd.f32 0.0, %v574
        %v576 = vpop.f32.mrf.mxu0
        %v577 = vadd.f32 0.0, %v576
        %578 = vdwg.mxu0
        %v579 = vpack.c.bf16 %v410, %v410
        %v580 = vpack.c.bf16 %v412, %v412
        %v581 = vpack.c.bf16 %v415, %v415
        %v582 = vpack.c.bf16 %v417, %v417
        %v583 = vpack.c.bf16 %v420, %v420
        %v584 = vpack.c.bf16 %v422, %v422
        %v585 = vpack.c.bf16 %v425, %v425
        %v586 = vpack.c.bf16 %v427, %v427
        %v587 = vpack.c.bf16 %v430, %v430
        %v588 = vpack.c.bf16 %v432, %v432
        %v589 = vpack.c.bf16 %v435, %v435
        %v590 = vpack.c.bf16 %v437, %v437
        %v591 = vpack.c.bf16 %v440, %v440
        %v592 = vpack.c.bf16 %v442, %v442
        %v593 = vpack.c.bf16 %v445, %v445
        %v594 = vpack.c.bf16 %v447, %v447
        %v595 = vpack.c.bf16 %v540, %v540
        %v596 = vpack.c.bf16 %v542, %v542
        %v597 = vpack.c.bf16 %v545, %v545
        %v598 = vpack.c.bf16 %v547, %v547
        %v599 = vpack.c.bf16 %v550, %v550
        %v600 = vpack.c.bf16 %v552, %v552
        %v601 = vpack.c.bf16 %v555, %v555
        %v602 = vpack.c.bf16 %v557, %v557
        %v603 = vpack.c.bf16 %v560, %v560
        %v604 = vpack.c.bf16 %v562, %v562
        %v605 = vpack.c.bf16 %v565, %v565
        %v606 = vpack.c.bf16 %v567, %v567
        %v607 = vpack.c.bf16 %v570, %v570
        %v608 = vpack.c.bf16 %v572, %v572
        %v609 = vpack.c.bf16 %v575, %v575
        %v610 = vpack.c.bf16 %v577, %v577
        %v627 = vunpack.c.l.b16 %v579
        %v628 = vunpack.c.l.b16 %v580
        %v629 = vunpack.c.l.b16 %v581
        %v630 = vunpack.c.l.b16 %v582
        %v631 = vunpack.c.l.b16 %v583
        %v632 = vunpack.c.l.b16 %v584
        %v633 = vunpack.c.l.b16 %v585
        %v634 = vunpack.c.l.b16 %v586
        %v635 = vunpack.c.l.b16 %v587
        %v636 = vunpack.c.l.b16 %v588
        %v637 = vunpack.c.l.b16 %v589
        %v638 = vunpack.c.l.b16 %v590
        %v639 = vunpack.c.l.b16 %v591
        %v640 = vunpack.c.l.b16 %v592
        %v641 = vunpack.c.l.b16 %v593
        %v642 = vunpack.c.l.b16 %v594
        %v643 = vpack.c.b16 %v628, %v627
        %v644 = vpack.c.b16 %v630, %v629
        %v645 = vpack.c.b16 %v632, %v631
        %v646 = vpack.c.b16 %v634, %v633
        %v647 = vpack.c.b16 %v636, %v635
        %v648 = vpack.c.b16 %v638, %v637
        %v649 = vpack.c.b16 %v640, %v639
        %v650 = vpack.c.b16 %v642, %v641
        %v675 = vunpack.c.l.b16 %v595
        %v676 = vunpack.c.l.b16 %v596
        %v677 = vunpack.c.l.b16 %v597
        %v678 = vunpack.c.l.b16 %v598
        %v679 = vunpack.c.l.b16 %v599
        %v680 = vunpack.c.l.b16 %v600
        %v681 = vunpack.c.l.b16 %v601
        %v682 = vunpack.c.l.b16 %v602
        %v683 = vunpack.c.l.b16 %v603
        %v684 = vunpack.c.l.b16 %v604
        %v685 = vunpack.c.l.b16 %v605
        %v686 = vunpack.c.l.b16 %v606
        %v687 = vunpack.c.l.b16 %v607
        %v688 = vunpack.c.l.b16 %v608
        %v689 = vunpack.c.l.b16 %v609
        %v690 = vunpack.c.l.b16 %v610
        %v691 = vpack.c.b16 %v676, %v675
        %v692 = vpack.c.b16 %v678, %v677
        %v693 = vpack.c.b16 %v680, %v679
        %v694 = vpack.c.b16 %v682, %v681
        %v695 = vpack.c.b16 %v684, %v683
        %v696 = vpack.c.b16 %v686, %v685
        %v697 = vpack.c.b16 %v688, %v687
        %v698 = vpack.c.b16 %v690, %v689
        %v707 = vld [vmem:[%s3] sm:$0x1]
        %v708 = vperm.slane %v707, 0
        %v725 = vunpack.c.l.b16 %v247
        %v726 = vunpack.c.l.b16 %v248
        %v727 = vunpack.c.l.b16 %v249
        %v728 = vunpack.c.l.b16 %v250
        %v729 = vunpack.c.l.b16 %v251
        %v730 = vunpack.c.l.b16 %v252
        %v731 = vunpack.c.l.b16 %v253
        %v732 = vunpack.c.l.b16 %v254
        %v733 = vunpack.c.l.b16 %v255
        %v734 = vunpack.c.l.b16 %v256
        %v735 = vunpack.c.l.b16 %v257
        %v736 = vunpack.c.l.b16 %v258
        %v737 = vunpack.c.l.b16 %v259
        %v738 = vunpack.c.l.b16 %v260
        %v739 = vunpack.c.l.b16 %v261
        %v740 = vunpack.c.l.b16 %v262
        %v741 = vpack.c.b16 %v726, %v725
        %v742 = vpack.c.b16 %v728, %v727
        %v743 = vpack.c.b16 %v730, %v729
        %v744 = vpack.c.b16 %v732, %v731
        %v745 = vpack.c.b16 %v734, %v733
        %v746 = vpack.c.b16 %v736, %v735
        %v747 = vpack.c.b16 %v738, %v737
        %v748 = vpack.c.b16 %v740, %v739
        %757 = vmatpush.bf16.msra.mxu0 %v650
        %758 = vmatpush.bf16.msra.mxu0 %v649
        %759 = vmatpush.bf16.msra.mxu0 %v648
        %760 = vmatpush.bf16.msra.mxu0 %v647
        %761 = vmatpush.bf16.msra.mxu0 %v646
        %762 = vmatpush.bf16.msra.mxu0 %v645
        %763 = vmatpush.bf16.msra.mxu0 %v644
        %764 = vmatpush.bf16.msra.mxu0 %v643
        %765 = vmatmul.bf16.gmra.mxu0 %v741
        %v766 = vpop.f32.mrf.mxu0
        %v767 = vadd.f32 %v708, %v766
        %v768 = vpop.f32.mrf.mxu0
        %v769 = vadd.f32 %v708, %v768
        %770 = vmatmul.bf16.gmra.mxu0 %v742
        %v771 = vpop.f32.mrf.mxu0
        %v772 = vadd.f32 %v708, %v771
        %v773 = vpop.f32.mrf.mxu0
        %v774 = vadd.f32 %v708, %v773
        %775 = vmatmul.bf16.gmra.mxu0 %v743
        %v776 = vpop.f32.mrf.mxu0
        %v777 = vadd.f32 %v708, %v776
        %v778 = vpop.f32.mrf.mxu0
        %v779 = vadd.f32 %v708, %v778
        %780 = vmatmul.bf16.gmra.mxu0 %v744
        %v781 = vpop.f32.mrf.mxu0
        %v782 = vadd.f32 %v708, %v781
        %v783 = vpop.f32.mrf.mxu0
        %v784 = vadd.f32 %v708, %v783
        %785 = vmatmul.bf16.gmra.mxu0 %v745
        %v786 = vpop.f32.mrf.mxu0
        %v787 = vadd.f32 %v708, %v786
        %v788 = vpop.f32.mrf.mxu0
        %v789 = vadd.f32 %v708, %v788
        %790 = vmatmul.bf16.gmra.mxu0 %v746
        %v791 = vpop.f32.mrf.mxu0
        %v792 = vadd.f32 %v708, %v791
        %v793 = vpop.f32.mrf.mxu0
        %v794 = vadd.f32 %v708, %v793
        %795 = vmatmul.bf16.gmra.mxu0 %v747
        %v796 = vpop.f32.mrf.mxu0
        %v797 = vadd.f32 %v708, %v796
        %v798 = vpop.f32.mrf.mxu0
        %v799 = vadd.f32 %v708, %v798
        %800 = vmatmul.bf16.gmra.mxu0 %v748
        %v801 = vpop.f32.mrf.mxu0
        %v802 = vadd.f32 %v708, %v801
        %v803 = vpop.f32.mrf.mxu0
        %v804 = vadd.f32 %v708, %v803
        %805 = vdwg.mxu0
        %806 = vmatpush.bf16.msra.mxu0 %v698
        %807 = vmatpush.bf16.msra.mxu0 %v697
        %808 = vmatpush.bf16.msra.mxu0 %v696
        %809 = vmatpush.bf16.msra.mxu0 %v695
        %810 = vmatpush.bf16.msra.mxu0 %v694
        %811 = vmatpush.bf16.msra.mxu0 %v693
        %812 = vmatpush.bf16.msra.mxu0 %v692
        %813 = vmatpush.bf16.msra.mxu0 %v691
        %814 = vmatmul.bf16.gmra.mxu0 %v741
        %v815 = vpop.f32.mrf.mxu0
        %v816 = vadd.f32 %v708, %v815
        %v817 = vpop.f32.mrf.mxu0
        %v818 = vadd.f32 %v708, %v817
        %819 = vmatmul.bf16.gmra.mxu0 %v742
        %v820 = vpop.f32.mrf.mxu0
        %v821 = vadd.f32 %v708, %v820
        %v822 = vpop.f32.mrf.mxu0
        %v823 = vadd.f32 %v708, %v822
        %824 = vmatmul.bf16.gmra.mxu0 %v743
        %v825 = vpop.f32.mrf.mxu0
        %v826 = vadd.f32 %v708, %v825
        %v827 = vpop.f32.mrf.mxu0
        %v828 = vadd.f32 %v708, %v827
        %829 = vmatmul.bf16.gmra.mxu0 %v744
        %v830 = vpop.f32.mrf.mxu0
        %v831 = vadd.f32 %v708, %v830
        %v832 = vpop.f32.mrf.mxu0
        %v833 = vadd.f32 %v708, %v832
        %834 = vmatmul.bf16.gmra.mxu0 %v745
        %v835 = vpop.f32.mrf.mxu0
        %v836 = vadd.f32 %v708, %v835
        %v837 = vpop.f32.mrf.mxu0
        %v838 = vadd.f32 %v708, %v837
        %839 = vmatmul.bf16.gmra.mxu0 %v746
        %v840 = vpop.f32.mrf.mxu0
        %v841 = vadd.f32 %v708, %v840
        %v842 = vpop.f32.mrf.mxu0
        %v843 = vadd.f32 %v708, %v842
        %844 = vmatmul.bf16.gmra.mxu0 %v747
        %v845 = vpop.f32.mrf.mxu0
        %v846 = vadd.f32 %v708, %v845
        %v847 = vpop.f32.mrf.mxu0
        %v848 = vadd.f32 %v708, %v847
        %849 = vmatmul.bf16.gmra.mxu0 %v748
        %v850 = vpop.f32.mrf.mxu0
        %v851 = vadd.f32 %v708, %v850
        %v852 = vpop.f32.mrf.mxu0
        %v853 = vadd.f32 %v708, %v852
        %854 = vdwg.mxu0
        %v855 = vmax.f32 %v767, 0.0
        %v856 = vmax.f32 %v816, 0.0
        %v857 = vmax.f32 %v769, 0.0
        %v858 = vmax.f32 %v818, 0.0
        %v859 = vmax.f32 %v772, 0.0
        %v860 = vmax.f32 %v821, 0.0
        %v861 = vmax.f32 %v774, 0.0
        %v862 = vmax.f32 %v823, 0.0
        %v863 = vmax.f32 %v777, 0.0
        %v864 = vmax.f32 %v826, 0.0
        %v865 = vmax.f32 %v779, 0.0
        %v866 = vmax.f32 %v828, 0.0
        %v867 = vmax.f32 %v782, 0.0
        %v868 = vmax.f32 %v831, 0.0
        %v869 = vmax.f32 %v784, 0.0
        %v870 = vmax.f32 %v833, 0.0
        %v871 = vmax.f32 %v787, 0.0
        %v872 = vmax.f32 %v836, 0.0
        %v873 = vmax.f32 %v789, 0.0
        %v874 = vmax.f32 %v838, 0.0
        %v875 = vmax.f32 %v792, 0.0
        %v876 = vmax.f32 %v841, 0.0
        %v877 = vmax.f32 %v794, 0.0
        %v878 = vmax.f32 %v843, 0.0
        %v879 = vmax.f32 %v797, 0.0
        %v880 = vmax.f32 %v846, 0.0
        %v881 = vmax.f32 %v799, 0.0
        %v882 = vmax.f32 %v848, 0.0
        %v883 = vmax.f32 %v802, 0.0
        %v884 = vmax.f32 %v851, 0.0
        %v885 = vmax.f32 %v804, 0.0
        %v886 = vmax.f32 %v853, 0.0
        %v887 = vpack.c.bf16 %v856, %v855
        %v888 = vpack.c.bf16 %v858, %v857
        %v889 = vpack.c.bf16 %v860, %v859
        %v890 = vpack.c.bf16 %v862, %v861
        %v891 = vpack.c.bf16 %v864, %v863
        %v892 = vpack.c.bf16 %v866, %v865
        %v893 = vpack.c.bf16 %v868, %v867
        %v894 = vpack.c.bf16 %v870, %v869
        %v895 = vpack.c.bf16 %v872, %v871
        %v896 = vpack.c.bf16 %v874, %v873
        %v897 = vpack.c.bf16 %v876, %v875
        %v898 = vpack.c.bf16 %v878, %v877
        %v899 = vpack.c.bf16 %v880, %v879
        %v900 = vpack.c.bf16 %v882, %v881
        %v901 = vpack.c.bf16 %v884, %v883
        %v902 = vpack.c.bf16 %v886, %v885
        %v919 = vunpack.c.l.b16 %v887
        %v920 = vunpack.c.l.b16 %v888
        %v921 = vunpack.c.l.b16 %v889
        %v922 = vunpack.c.l.b16 %v890
        %v923 = vunpack.c.l.b16 %v891
        %v924 = vunpack.c.l.b16 %v892
        %v925 = vunpack.c.l.b16 %v893
        %v926 = vunpack.c.l.b16 %v894
        %v927 = vunpack.c.l.b16 %v895
        %v928 = vunpack.c.l.b16 %v896
        %v929 = vunpack.c.l.b16 %v897
        %v930 = vunpack.c.l.b16 %v898
        %v931 = vunpack.c.l.b16 %v899
        %v932 = vunpack.c.l.b16 %v900
        %v933 = vunpack.c.l.b16 %v901
        %v934 = vunpack.c.l.b16 %v902
        %v935 = vpack.c.b16 %v920, %v919
        %v936 = vpack.c.b16 %v922, %v921
        %v937 = vpack.c.b16 %v924, %v923
        %v938 = vpack.c.b16 %v926, %v925
        %v939 = vpack.c.b16 %v928, %v927
        %v940 = vpack.c.b16 %v930, %v929
        %v941 = vpack.c.b16 %v932, %v931
        %v942 = vpack.c.b16 %v934, %v933
        %v967 = vunpack.c.l.b16 %v265
        %v968 = vunpack.c.l.b16 %v266
        %v969 = vunpack.c.l.b16 %v267
        %v970 = vunpack.c.l.b16 %v268
        %v971 = vunpack.c.l.b16 %v269
        %v972 = vunpack.c.l.b16 %v270
        %v973 = vunpack.c.l.b16 %v271
        %v974 = vunpack.c.l.b16 %v272
        %v975 = vunpack.c.l.b16 %v273
        %v976 = vunpack.c.l.b16 %v274
        %v977 = vunpack.c.l.b16 %v275
        %v978 = vunpack.c.l.b16 %v276
        %v979 = vunpack.c.l.b16 %v277
        %v980 = vunpack.c.l.b16 %v278
        %v981 = vunpack.c.l.b16 %v279
        %v982 = vunpack.c.l.b16 %v280
        %v983 = vpack.c.b16 %v968, %v967
        %v984 = vpack.c.b16 %v970, %v969
        %v985 = vpack.c.b16 %v972, %v971
        %v986 = vpack.c.b16 %v974, %v973
        %v987 = vpack.c.b16 %v976, %v975
        %v988 = vpack.c.b16 %v978, %v977
        %v989 = vpack.c.b16 %v980, %v979
        %v990 = vpack.c.b16 %v982, %v981
        %999 = vmatpush.bf16.msra.mxu0 %v990
        %1000 = vmatpush.bf16.msra.mxu0 %v989
        %1001 = vmatpush.bf16.msra.mxu0 %v988
        %1002 = vmatpush.bf16.msra.mxu0 %v987
        %1003 = vmatpush.bf16.msra.mxu0 %v986
        %1004 = vmatpush.bf16.msra.mxu0 %v985
        %1005 = vmatpush.bf16.msra.mxu0 %v984
        %1006 = vmatpush.bf16.msra.mxu0 %v983
        %1007 = vmatmul.bf16.gmra.mxu0 %v935
        %v1008 = vpop.f32.mrf.mxu0
        %v1009 = vadd.f32 0.0, %v1008
        %v1010 = vpop.f32.mrf.mxu0
        %v1011 = vadd.f32 0.0, %v1010
        %1012 = vmatmul.bf16.gmra.mxu0 %v936
        %v1013 = vpop.f32.mrf.mxu0
        %v1014 = vadd.f32 0.0, %v1013
        %v1015 = vpop.f32.mrf.mxu0
        %v1016 = vadd.f32 0.0, %v1015
        %1017 = vmatmul.bf16.gmra.mxu0 %v937
        %v1018 = vpop.f32.mrf.mxu0
        %v1019 = vadd.f32 0.0, %v1018
        %v1020 = vpop.f32.mrf.mxu0
        %v1021 = vadd.f32 0.0, %v1020
        %1022 = vmatmul.bf16.gmra.mxu0 %v938
        %v1023 = vpop.f32.mrf.mxu0
        %v1024 = vadd.f32 0.0, %v1023
        %v1025 = vpop.f32.mrf.mxu0
        %v1026 = vadd.f32 0.0, %v1025
        %1027 = vmatmul.bf16.gmra.mxu0 %v939
        %v1028 = vpop.f32.mrf.mxu0
        %v1029 = vadd.f32 0.0, %v1028
        %v1030 = vpop.f32.mrf.mxu0
        %v1031 = vadd.f32 0.0, %v1030
        %1032 = vmatmul.bf16.gmra.mxu0 %v940
        %v1033 = vpop.f32.mrf.mxu0
        %v1034 = vadd.f32 0.0, %v1033
        %v1035 = vpop.f32.mrf.mxu0
        %v1036 = vadd.f32 0.0, %v1035
        %1037 = vmatmul.bf16.gmra.mxu0 %v941
        %v1038 = vpop.f32.mrf.mxu0
        %v1039 = vadd.f32 0.0, %v1038
        %v1040 = vpop.f32.mrf.mxu0
        %v1041 = vadd.f32 0.0, %v1040
        %1042 = vmatmul.bf16.gmra.mxu0 %v942
        %v1043 = vpop.f32.mrf.mxu0
        %v1044 = vadd.f32 0.0, %v1043
        %v1045 = vpop.f32.mrf.mxu0
        %v1046 = vadd.f32 0.0, %v1045
        %1047 = vdwg.mxu0
        %v1048 = vunpack.c.h.b16 %v887
        %v1049 = vunpack.c.h.b16 %v888
        %v1050 = vunpack.c.h.b16 %v889
        %v1051 = vunpack.c.h.b16 %v890
        %v1052 = vunpack.c.h.b16 %v891
        %v1053 = vunpack.c.h.b16 %v892
        %v1054 = vunpack.c.h.b16 %v893
        %v1055 = vunpack.c.h.b16 %v894
        %v1056 = vunpack.c.h.b16 %v895
        %v1057 = vunpack.c.h.b16 %v896
        %v1058 = vunpack.c.h.b16 %v897
        %v1059 = vunpack.c.h.b16 %v898
        %v1060 = vunpack.c.h.b16 %v899
        %v1061 = vunpack.c.h.b16 %v900
        %v1062 = vunpack.c.h.b16 %v901
        %v1063 = vunpack.c.h.b16 %v902
        %v1064 = vpack.c.b16 %v1049, %v1048
        %v1065 = vpack.c.b16 %v1051, %v1050
        %v1066 = vpack.c.b16 %v1053, %v1052
        %v1067 = vpack.c.b16 %v1055, %v1054
        %v1068 = vpack.c.b16 %v1057, %v1056
        %v1069 = vpack.c.b16 %v1059, %v1058
        %v1070 = vpack.c.b16 %v1061, %v1060
        %v1071 = vpack.c.b16 %v1063, %v1062
        %1080 = vmatpush.bf16.msra.mxu0 %v990
        %1081 = vmatpush.bf16.msra.mxu0 %v989
        %1082 = vmatpush.bf16.msra.mxu0 %v988
        %1083 = vmatpush.bf16.msra.mxu0 %v987
        %1084 = vmatpush.bf16.msra.mxu0 %v986
        %1085 = vmatpush.bf16.msra.mxu0 %v985
        %1086 = vmatpush.bf16.msra.mxu0 %v984
        %1087 = vmatpush.bf16.msra.mxu0 %v983
        %1088 = vmatmul.bf16.gmra.mxu0 %v1064
        %v1089 = vpop.f32.mrf.mxu0
        %v1090 = vadd.f32 0.0, %v1089
        %v1091 = vpop.f32.mrf.mxu0
        %v1092 = vadd.f32 0.0, %v1091
        %1093 = vmatmul.bf16.gmra.mxu0 %v1065
        %v1094 = vpop.f32.mrf.mxu0
        %v1095 = vadd.f32 0.0, %v1094
        %v1096 = vpop.f32.mrf.mxu0
        %v1097 = vadd.f32 0.0, %v1096
        %1098 = vmatmul.bf16.gmra.mxu0 %v1066
        %v1099 = vpop.f32.mrf.mxu0
        %v1100 = vadd.f32 0.0, %v1099
        %v1101 = vpop.f32.mrf.mxu0
        %v1102 = vadd.f32 0.0, %v1101
        %1103 = vmatmul.bf16.gmra.mxu0 %v1067
        %v1104 = vpop.f32.mrf.mxu0
        %v1105 = vadd.f32 0.0, %v1104
        %v1106 = vpop.f32.mrf.mxu0
        %v1107 = vadd.f32 0.0, %v1106
        %1108 = vmatmul.bf16.gmra.mxu0 %v1068
        %v1109 = vpop.f32.mrf.mxu0
        %v1110 = vadd.f32 0.0, %v1109
        %v1111 = vpop.f32.mrf.mxu0
        %v1112 = vadd.f32 0.0, %v1111
        %1113 = vmatmul.bf16.gmra.mxu0 %v1069
        %v1114 = vpop.f32.mrf.mxu0
        %v1115 = vadd.f32 0.0, %v1114
        %v1116 = vpop.f32.mrf.mxu0
        %v1117 = vadd.f32 0.0, %v1116
        %1118 = vmatmul.bf16.gmra.mxu0 %v1070
        %v1119 = vpop.f32.mrf.mxu0
        %v1120 = vadd.f32 0.0, %v1119
        %v1121 = vpop.f32.mrf.mxu0
        %v1122 = vadd.f32 0.0, %v1121
        %1123 = vmatmul.bf16.gmra.mxu0 %v1071
        %v1124 = vpop.f32.mrf.mxu0
        %v1125 = vadd.f32 0.0, %v1124
        %v1126 = vpop.f32.mrf.mxu0
        %v1127 = vadd.f32 0.0, %v1126
        %1128 = vdwg.mxu0
        %v1129 = vpack.c.bf16 %v1009, %v1009
        %v1130 = vpack.c.bf16 %v1011, %v1011
        %v1131 = vpack.c.bf16 %v1014, %v1014
        %v1132 = vpack.c.bf16 %v1016, %v1016
        %v1133 = vpack.c.bf16 %v1019, %v1019
        %v1134 = vpack.c.bf16 %v1021, %v1021
        %v1135 = vpack.c.bf16 %v1024, %v1024
        %v1136 = vpack.c.bf16 %v1026, %v1026
        %v1137 = vpack.c.bf16 %v1029, %v1029
        %v1138 = vpack.c.bf16 %v1031, %v1031
        %v1139 = vpack.c.bf16 %v1034, %v1034
        %v1140 = vpack.c.bf16 %v1036, %v1036
        %v1141 = vpack.c.bf16 %v1039, %v1039
        %v1142 = vpack.c.bf16 %v1041, %v1041
        %v1143 = vpack.c.bf16 %v1044, %v1044
        %v1144 = vpack.c.bf16 %v1046, %v1046
        %v1145 = vpack.c.bf16 %v1090, %v1090
        %v1146 = vpack.c.bf16 %v1092, %v1092
        %v1147 = vpack.c.bf16 %v1095, %v1095
        %v1148 = vpack.c.bf16 %v1097, %v1097
        %v1149 = vpack.c.bf16 %v1100, %v1100
        %v1150 = vpack.c.bf16 %v1102, %v1102
        %v1151 = vpack.c.bf16 %v1105, %v1105
        %v1152 = vpack.c.bf16 %v1107, %v1107
        %v1153 = vpack.c.bf16 %v1110, %v1110
        %v1154 = vpack.c.bf16 %v1112, %v1112
        %v1155 = vpack.c.bf16 %v1115, %v1115
        %v1156 = vpack.c.bf16 %v1117, %v1117
        %v1157 = vpack.c.bf16 %v1120, %v1120
        %v1158 = vpack.c.bf16 %v1122, %v1122
        %v1159 = vpack.c.bf16 %v1125, %v1125
        %v1160 = vpack.c.bf16 %v1127, %v1127
        %v1177 = vunpack.c.l.b16 %v1129
        %v1178 = vunpack.c.l.b16 %v1130
        %v1179 = vunpack.c.l.b16 %v1131
        %v1180 = vunpack.c.l.b16 %v1132
        %v1181 = vunpack.c.l.b16 %v1133
        %v1182 = vunpack.c.l.b16 %v1134
        %v1183 = vunpack.c.l.b16 %v1135
        %v1184 = vunpack.c.l.b16 %v1136
        %v1185 = vunpack.c.l.b16 %v1137
        %v1186 = vunpack.c.l.b16 %v1138
        %v1187 = vunpack.c.l.b16 %v1139
        %v1188 = vunpack.c.l.b16 %v1140
        %v1189 = vunpack.c.l.b16 %v1141
        %v1190 = vunpack.c.l.b16 %v1142
        %v1191 = vunpack.c.l.b16 %v1143
        %v1192 = vunpack.c.l.b16 %v1144
        %v1193 = vpack.c.b16 %v1178, %v1177
        %v1194 = vpack.c.b16 %v1180, %v1179
        %v1195 = vpack.c.b16 %v1182, %v1181
        %v1196 = vpack.c.b16 %v1184, %v1183
        %v1197 = vpack.c.b16 %v1186, %v1185
        %v1198 = vpack.c.b16 %v1188, %v1187
        %v1199 = vpack.c.b16 %v1190, %v1189
        %v1200 = vpack.c.b16 %v1192, %v1191
        %v1225 = vunpack.c.l.b16 %v1145
        %v1226 = vunpack.c.l.b16 %v1146
        %v1227 = vunpack.c.l.b16 %v1147
        %v1228 = vunpack.c.l.b16 %v1148
        %v1229 = vunpack.c.l.b16 %v1149
        %v1230 = vunpack.c.l.b16 %v1150
        %v1231 = vunpack.c.l.b16 %v1151
        %v1232 = vunpack.c.l.b16 %v1152
        %v1233 = vunpack.c.l.b16 %v1153
        %v1234 = vunpack.c.l.b16 %v1154
        %v1235 = vunpack.c.l.b16 %v1155
        %v1236 = vunpack.c.l.b16 %v1156
        %v1237 = vunpack.c.l.b16 %v1157
        %v1238 = vunpack.c.l.b16 %v1158
        %v1239 = vunpack.c.l.b16 %v1159
        %v1240 = vunpack.c.l.b16 %v1160
        %v1241 = vpack.c.b16 %v1226, %v1225
        %v1242 = vpack.c.b16 %v1228, %v1227
        %v1243 = vpack.c.b16 %v1230, %v1229
        %v1244 = vpack.c.b16 %v1232, %v1231
        %v1245 = vpack.c.b16 %v1234, %v1233
        %v1246 = vpack.c.b16 %v1236, %v1235
        %v1247 = vpack.c.b16 %v1238, %v1237
        %v1248 = vpack.c.b16 %v1240, %v1239
        %v1257 = vld [vmem:[%s3 + $0x1] sm:$0x1]
        %v1258 = vperm.slane %v1257, 0
        %1259 = vmatpush.bf16.msra.mxu0 %v1200
        %1260 = vmatpush.bf16.msra.mxu0 %v1199
        %1261 = vmatpush.bf16.msra.mxu0 %v1198
        %1262 = vmatpush.bf16.msra.mxu0 %v1197
        %1263 = vmatpush.bf16.msra.mxu0 %v1196
        %1264 = vmatpush.bf16.msra.mxu0 %v1195
        %1265 = vmatpush.bf16.msra.mxu0 %v1194
        %1266 = vmatpush.bf16.msra.mxu0 %v1193
        %1267 = vmatmul.bf16.gmra.mxu0 %v741
        %v1268 = vpop.f32.mrf.mxu0
        %v1269 = vadd.f32 %v1258, %v1268
        %v1270 = vpop.f32.mrf.mxu0
        %v1271 = vadd.f32 %v1258, %v1270
        %1272 = vmatmul.bf16.gmra.mxu0 %v742
        %v1273 = vpop.f32.mrf.mxu0
        %v1274 = vadd.f32 %v1258, %v1273
        %v1275 = vpop.f32.mrf.mxu0
        %v1276 = vadd.f32 %v1258, %v1275
        %1277 = vmatmul.bf16.gmra.mxu0 %v743
        %v1278 = vpop.f32.mrf.mxu0
        %v1279 = vadd.f32 %v1258, %v1278
        %v1280 = vpop.f32.mrf.mxu0
        %v1281 = vadd.f32 %v1258, %v1280
        %1282 = vmatmul.bf16.gmra.mxu0 %v744
        %v1283 = vpop.f32.mrf.mxu0
        %v1284 = vadd.f32 %v1258, %v1283
        %v1285 = vpop.f32.mrf.mxu0
        %v1286 = vadd.f32 %v1258, %v1285
        %1287 = vmatmul.bf16.gmra.mxu0 %v745
        %v1288 = vpop.f32.mrf.mxu0
        %v1289 = vadd.f32 %v1258, %v1288
        %v1290 = vpop.f32.mrf.mxu0
        %v1291 = vadd.f32 %v1258, %v1290
        %1292 = vmatmul.bf16.gmra.mxu0 %v746
        %v1293 = vpop.f32.mrf.mxu0
        %v1294 = vadd.f32 %v1258, %v1293
        %v1295 = vpop.f32.mrf.mxu0
        %v1296 = vadd.f32 %v1258, %v1295
        %1297 = vmatmul.bf16.gmra.mxu0 %v747
        %v1298 = vpop.f32.mrf.mxu0
        %v1299 = vadd.f32 %v1258, %v1298
        %v1300 = vpop.f32.mrf.mxu0
        %v1301 = vadd.f32 %v1258, %v1300
        %1302 = vmatmul.bf16.gmra.mxu0 %v748
        %v1303 = vpop.f32.mrf.mxu0
        %v1304 = vadd.f32 %v1258, %v1303
        %v1305 = vpop.f32.mrf.mxu0
        %v1306 = vadd.f32 %v1258, %v1305
        %1307 = vdwg.mxu0
        %1308 = vmatpush.bf16.msra.mxu0 %v1248
        %1309 = vmatpush.bf16.msra.mxu0 %v1247
        %1310 = vmatpush.bf16.msra.mxu0 %v1246
        %1311 = vmatpush.bf16.msra.mxu0 %v1245
        %1312 = vmatpush.bf16.msra.mxu0 %v1244
        %1313 = vmatpush.bf16.msra.mxu0 %v1243
        %1314 = vmatpush.bf16.msra.mxu0 %v1242
        %1315 = vmatpush.bf16.msra.mxu0 %v1241
        %1316 = vmatmul.bf16.gmra.mxu0 %v741
        %v1317 = vpop.f32.mrf.mxu0
        %v1318 = vadd.f32 %v1258, %v1317
        %v1319 = vpop.f32.mrf.mxu0
        %v1320 = vadd.f32 %v1258, %v1319
        %1321 = vmatmul.bf16.gmra.mxu0 %v742
        %v1322 = vpop.f32.mrf.mxu0
        %v1323 = vadd.f32 %v1258, %v1322
        %v1324 = vpop.f32.mrf.mxu0
        %v1325 = vadd.f32 %v1258, %v1324
        %1326 = vmatmul.bf16.gmra.mxu0 %v743
        %v1327 = vpop.f32.mrf.mxu0
        %v1328 = vadd.f32 %v1258, %v1327
        %v1329 = vpop.f32.mrf.mxu0
        %v1330 = vadd.f32 %v1258, %v1329
        %1331 = vmatmul.bf16.gmra.mxu0 %v744
        %v1332 = vpop.f32.mrf.mxu0
        %v1333 = vadd.f32 %v1258, %v1332
        %v1334 = vpop.f32.mrf.mxu0
        %v1335 = vadd.f32 %v1258, %v1334
        %1336 = vmatmul.bf16.gmra.mxu0 %v745
        %v1337 = vpop.f32.mrf.mxu0
        %v1338 = vadd.f32 %v1258, %v1337
        %v1339 = vpop.f32.mrf.mxu0
        %v1340 = vadd.f32 %v1258, %v1339
        %1341 = vmatmul.bf16.gmra.mxu0 %v746
        %v1342 = vpop.f32.mrf.mxu0
        %v1343 = vadd.f32 %v1258, %v1342
        %v1344 = vpop.f32.mrf.mxu0
        %v1345 = vadd.f32 %v1258, %v1344
        %1346 = vmatmul.bf16.gmra.mxu0 %v747
        %v1347 = vpop.f32.mrf.mxu0
        %v1348 = vadd.f32 %v1258, %v1347
        %v1349 = vpop.f32.mrf.mxu0
        %v1350 = vadd.f32 %v1258, %v1349
        %1351 = vmatmul.bf16.gmra.mxu0 %v748
        %v1352 = vpop.f32.mrf.mxu0
        %v1353 = vadd.f32 %v1258, %v1352
        %v1354 = vpop.f32.mrf.mxu0
        %v1355 = vadd.f32 %v1258, %v1354
        %1356 = vdwg.mxu0
        %v1357 = vmax.f32 %v1269, 0.0
        %v1358 = vmax.f32 %v1318, 0.0
        %v1359 = vmax.f32 %v1271, 0.0
        %v1360 = vmax.f32 %v1320, 0.0
        %v1361 = vmax.f32 %v1274, 0.0
        %v1362 = vmax.f32 %v1323, 0.0
        %v1363 = vmax.f32 %v1276, 0.0
        %v1364 = vmax.f32 %v1325, 0.0
        %v1365 = vmax.f32 %v1279, 0.0
        %v1366 = vmax.f32 %v1328, 0.0
        %v1367 = vmax.f32 %v1281, 0.0
        %v1368 = vmax.f32 %v1330, 0.0
        %v1369 = vmax.f32 %v1284, 0.0
        %v1370 = vmax.f32 %v1333, 0.0
        %v1371 = vmax.f32 %v1286, 0.0
        %v1372 = vmax.f32 %v1335, 0.0
        %v1373 = vmax.f32 %v1289, 0.0
        %v1374 = vmax.f32 %v1338, 0.0
        %v1375 = vmax.f32 %v1291, 0.0
        %v1376 = vmax.f32 %v1340, 0.0
        %v1377 = vmax.f32 %v1294, 0.0
        %v1378 = vmax.f32 %v1343, 0.0
        %v1379 = vmax.f32 %v1296, 0.0
        %v1380 = vmax.f32 %v1345, 0.0
        %v1381 = vmax.f32 %v1299, 0.0
        %v1382 = vmax.f32 %v1348, 0.0
        %v1383 = vmax.f32 %v1301, 0.0
        %v1384 = vmax.f32 %v1350, 0.0
        %v1385 = vmax.f32 %v1304, 0.0
        %v1386 = vmax.f32 %v1353, 0.0
        %v1387 = vmax.f32 %v1306, 0.0
        %v1388 = vmax.f32 %v1355, 0.0
        %v1389 = vpack.c.bf16 %v1358, %v1357
        %v1390 = vpack.c.bf16 %v1360, %v1359
        %v1391 = vpack.c.bf16 %v1362, %v1361
        %v1392 = vpack.c.bf16 %v1364, %v1363
        %v1393 = vpack.c.bf16 %v1366, %v1365
        %v1394 = vpack.c.bf16 %v1368, %v1367
        %v1395 = vpack.c.bf16 %v1370, %v1369
        %v1396 = vpack.c.bf16 %v1372, %v1371
        %v1397 = vpack.c.bf16 %v1374, %v1373
        %v1398 = vpack.c.bf16 %v1376, %v1375
        %v1399 = vpack.c.bf16 %v1378, %v1377
        %v1400 = vpack.c.bf16 %v1380, %v1379
        %v1401 = vpack.c.bf16 %v1382, %v1381
        %v1402 = vpack.c.bf16 %v1384, %v1383
        %v1403 = vpack.c.bf16 %v1386, %v1385
        %v1404 = vpack.c.bf16 %v1388, %v1387
        %v1421 = vunpack.c.l.b16 %v1389
        %v1422 = vunpack.c.l.b16 %v1390
        %v1423 = vunpack.c.l.b16 %v1391
        %v1424 = vunpack.c.l.b16 %v1392
        %v1425 = vunpack.c.l.b16 %v1393
        %v1426 = vunpack.c.l.b16 %v1394
        %v1427 = vunpack.c.l.b16 %v1395
        %v1428 = vunpack.c.l.b16 %v1396
        %v1429 = vunpack.c.l.b16 %v1397
        %v1430 = vunpack.c.l.b16 %v1398
        %v1431 = vunpack.c.l.b16 %v1399
        %v1432 = vunpack.c.l.b16 %v1400
        %v1433 = vunpack.c.l.b16 %v1401
        %v1434 = vunpack.c.l.b16 %v1402
        %v1435 = vunpack.c.l.b16 %v1403
        %v1436 = vunpack.c.l.b16 %v1404
        %v1437 = vpack.c.b16 %v1422, %v1421
        %v1438 = vpack.c.b16 %v1424, %v1423
        %v1439 = vpack.c.b16 %v1426, %v1425
        %v1440 = vpack.c.b16 %v1428, %v1427
        %v1441 = vpack.c.b16 %v1430, %v1429
        %v1442 = vpack.c.b16 %v1432, %v1431
        %v1443 = vpack.c.b16 %v1434, %v1433
        %v1444 = vpack.c.b16 %v1436, %v1435
        %v1469 = vunpack.c.l.b16 %v282
        %v1470 = vunpack.c.l.b16 %v283
        %v1471 = vunpack.c.l.b16 %v284
        %v1472 = vunpack.c.l.b16 %v285
        %v1473 = vunpack.c.l.b16 %v286
        %v1474 = vunpack.c.l.b16 %v287
        %v1475 = vunpack.c.l.b16 %v288
        %v1476 = vunpack.c.l.b16 %v289
        %v1477 = vunpack.c.l.b16 %v290
        %v1478 = vunpack.c.l.b16 %v291
        %v1479 = vunpack.c.l.b16 %v292
        %v1480 = vunpack.c.l.b16 %v293
        %v1481 = vunpack.c.l.b16 %v294
        %v1482 = vunpack.c.l.b16 %v295
        %v1483 = vunpack.c.l.b16 %v296
        %v1484 = vunpack.c.l.b16 %v297
        %v1485 = vpack.c.b16 %v1470, %v1469
        %v1486 = vpack.c.b16 %v1472, %v1471
        %v1487 = vpack.c.b16 %v1474, %v1473
        %v1488 = vpack.c.b16 %v1476, %v1475
        %v1489 = vpack.c.b16 %v1478, %v1477
        %v1490 = vpack.c.b16 %v1480, %v1479
        %v1491 = vpack.c.b16 %v1482, %v1481
        %v1492 = vpack.c.b16 %v1484, %v1483
        %1501 = vmatpush.bf16.msra.mxu0 %v1492
        %1502 = vmatpush.bf16.msra.mxu0 %v1491
        %1503 = vmatpush.bf16.msra.mxu0 %v1490
        %1504 = vmatpush.bf16.msra.mxu0 %v1489
        %1505 = vmatpush.bf16.msra.mxu0 %v1488
        %1506 = vmatpush.bf16.msra.mxu0 %v1487
        %1507 = vmatpush.bf16.msra.mxu0 %v1486
        %1508 = vmatpush.bf16.msra.mxu0 %v1485
        %1509 = vmatmul.bf16.gmra.mxu0 %v1437
        %v1510 = vpop.f32.mrf.mxu0
        %v1511 = vadd.f32 0.0, %v1510
        %v1512 = vpop.f32.mrf.mxu0
        %v1513 = vadd.f32 0.0, %v1512
        %1514 = vmatmul.bf16.gmra.mxu0 %v1438
        %v1515 = vpop.f32.mrf.mxu0
        %v1516 = vadd.f32 0.0, %v1515
        %v1517 = vpop.f32.mrf.mxu0
        %v1518 = vadd.f32 0.0, %v1517
        %1519 = vmatmul.bf16.gmra.mxu0 %v1439
        %v1520 = vpop.f32.mrf.mxu0
        %v1521 = vadd.f32 0.0, %v1520
        %v1522 = vpop.f32.mrf.mxu0
        %v1523 = vadd.f32 0.0, %v1522
        %1524 = vmatmul.bf16.gmra.mxu0 %v1440
        %v1525 = vpop.f32.mrf.mxu0
        %v1526 = vadd.f32 0.0, %v1525
        %v1527 = vpop.f32.mrf.mxu0
        %v1528 = vadd.f32 0.0, %v1527
        %1529 = vmatmul.bf16.gmra.mxu0 %v1441
        %v1530 = vpop.f32.mrf.mxu0
        %v1531 = vadd.f32 0.0, %v1530
        %v1532 = vpop.f32.mrf.mxu0
        %v1533 = vadd.f32 0.0, %v1532
        %1534 = vmatmul.bf16.gmra.mxu0 %v1442
        %v1535 = vpop.f32.mrf.mxu0
        %v1536 = vadd.f32 0.0, %v1535
        %v1537 = vpop.f32.mrf.mxu0
        %v1538 = vadd.f32 0.0, %v1537
        %1539 = vmatmul.bf16.gmra.mxu0 %v1443
        %v1540 = vpop.f32.mrf.mxu0
        %v1541 = vadd.f32 0.0, %v1540
        %v1542 = vpop.f32.mrf.mxu0
        %v1543 = vadd.f32 0.0, %v1542
        %1544 = vmatmul.bf16.gmra.mxu0 %v1444
        %v1545 = vpop.f32.mrf.mxu0
        %v1546 = vadd.f32 0.0, %v1545
        %v1547 = vpop.f32.mrf.mxu0
        %v1548 = vadd.f32 0.0, %v1547
        %1549 = vdwg.mxu0
        %v1550 = vunpack.c.h.b16 %v1389
        %v1551 = vunpack.c.h.b16 %v1390
        %v1552 = vunpack.c.h.b16 %v1391
        %v1553 = vunpack.c.h.b16 %v1392
        %v1554 = vunpack.c.h.b16 %v1393
        %v1555 = vunpack.c.h.b16 %v1394
        %v1556 = vunpack.c.h.b16 %v1395
        %v1557 = vunpack.c.h.b16 %v1396
        %v1558 = vunpack.c.h.b16 %v1397
        %v1559 = vunpack.c.h.b16 %v1398
        %v1560 = vunpack.c.h.b16 %v1399
        %v1561 = vunpack.c.h.b16 %v1400
        %v1562 = vunpack.c.h.b16 %v1401
        %v1563 = vunpack.c.h.b16 %v1402
        %v1564 = vunpack.c.h.b16 %v1403
        %v1565 = vunpack.c.h.b16 %v1404
        %v1566 = vpack.c.b16 %v1551, %v1550
        %v1567 = vpack.c.b16 %v1553, %v1552
        %v1568 = vpack.c.b16 %v1555, %v1554
        %v1569 = vpack.c.b16 %v1557, %v1556
        %v1570 = vpack.c.b16 %v1559, %v1558
        %v1571 = vpack.c.b16 %v1561, %v1560
        %v1572 = vpack.c.b16 %v1563, %v1562
        %v1573 = vpack.c.b16 %v1565, %v1564
        %1582 = vmatpush.bf16.msra.mxu0 %v1492
        %1583 = vmatpush.bf16.msra.mxu0 %v1491
        %1584 = vmatpush.bf16.msra.mxu0 %v1490
        %1585 = vmatpush.bf16.msra.mxu0 %v1489
        %1586 = vmatpush.bf16.msra.mxu0 %v1488
        %1587 = vmatpush.bf16.msra.mxu0 %v1487
        %1588 = vmatpush.bf16.msra.mxu0 %v1486
        %1589 = vmatpush.bf16.msra.mxu0 %v1485
        %1590 = vmatmul.bf16.gmra.mxu0 %v1566
        %v1591 = vpop.f32.mrf.mxu0
        %v1592 = vadd.f32 0.0, %v1591
        %v1593 = vpop.f32.mrf.mxu0
        %v1594 = vadd.f32 0.0, %v1593
        %1595 = vmatmul.bf16.gmra.mxu0 %v1567
        %v1596 = vpop.f32.mrf.mxu0
        %v1597 = vadd.f32 0.0, %v1596
        %v1598 = vpop.f32.mrf.mxu0
        %v1599 = vadd.f32 0.0, %v1598
        %1600 = vmatmul.bf16.gmra.mxu0 %v1568
        %v1601 = vpop.f32.mrf.mxu0
        %v1602 = vadd.f32 0.0, %v1601
        %v1603 = vpop.f32.mrf.mxu0
        %v1604 = vadd.f32 0.0, %v1603
        %1605 = vmatmul.bf16.gmra.mxu0 %v1569
        %v1606 = vpop.f32.mrf.mxu0
        %v1607 = vadd.f32 0.0, %v1606
        %v1608 = vpop.f32.mrf.mxu0
        %v1609 = vadd.f32 0.0, %v1608
        %1610 = vmatmul.bf16.gmra.mxu0 %v1570
        %v1611 = vpop.f32.mrf.mxu0
        %v1612 = vadd.f32 0.0, %v1611
        %v1613 = vpop.f32.mrf.mxu0
        %v1614 = vadd.f32 0.0, %v1613
        %1615 = vmatmul.bf16.gmra.mxu0 %v1571
        %v1616 = vpop.f32.mrf.mxu0
        %v1617 = vadd.f32 0.0, %v1616
        %v1618 = vpop.f32.mrf.mxu0
        %v1619 = vadd.f32 0.0, %v1618
        %1620 = vmatmul.bf16.gmra.mxu0 %v1572
        %v1621 = vpop.f32.mrf.mxu0
        %v1622 = vadd.f32 0.0, %v1621
        %v1623 = vpop.f32.mrf.mxu0
        %v1624 = vadd.f32 0.0, %v1623
        %1625 = vmatmul.bf16.gmra.mxu0 %v1573
        %v1626 = vpop.f32.mrf.mxu0
        %v1627 = vadd.f32 0.0, %v1626
        %v1628 = vpop.f32.mrf.mxu0
        %v1629 = vadd.f32 0.0, %v1628
        %1630 = vdwg.mxu0
        %v1631 = vpack.c.bf16 %v1511, %v1511
        %v1632 = vpack.c.bf16 %v1513, %v1513
        %v1633 = vpack.c.bf16 %v1516, %v1516
        %v1634 = vpack.c.bf16 %v1518, %v1518
        %v1635 = vpack.c.bf16 %v1521, %v1521
        %v1636 = vpack.c.bf16 %v1523, %v1523
        %v1637 = vpack.c.bf16 %v1526, %v1526
        %v1638 = vpack.c.bf16 %v1528, %v1528
        %v1639 = vpack.c.bf16 %v1531, %v1531
        %v1640 = vpack.c.bf16 %v1533, %v1533
        %v1641 = vpack.c.bf16 %v1536, %v1536
        %v1642 = vpack.c.bf16 %v1538, %v1538
        %v1643 = vpack.c.bf16 %v1541, %v1541
        %v1644 = vpack.c.bf16 %v1543, %v1543
        %v1645 = vpack.c.bf16 %v1546, %v1546
        %v1646 = vpack.c.bf16 %v1548, %v1548
        %v1647 = vpack.c.bf16 %v1592, %v1592
        %v1648 = vpack.c.bf16 %v1594, %v1594
        %v1649 = vpack.c.bf16 %v1597, %v1597
        %v1650 = vpack.c.bf16 %v1599, %v1599
        %v1651 = vpack.c.bf16 %v1602, %v1602
        %v1652 = vpack.c.bf16 %v1604, %v1604
        %v1653 = vpack.c.bf16 %v1607, %v1607
        %v1654 = vpack.c.bf16 %v1609, %v1609
        %v1655 = vpack.c.bf16 %v1612, %v1612
        %v1656 = vpack.c.bf16 %v1614, %v1614
        %v1657 = vpack.c.bf16 %v1617, %v1617
        %v1658 = vpack.c.bf16 %v1619, %v1619
        %v1659 = vpack.c.bf16 %v1622, %v1622
        %v1660 = vpack.c.bf16 %v1624, %v1624
        %v1661 = vpack.c.bf16 %v1627, %v1627
        %v1662 = vpack.c.bf16 %v1629, %v1629
        %v1679 = vunpack.c.l.b16 %v1631
        %v1680 = vunpack.c.l.b16 %v1632
        %v1681 = vunpack.c.l.b16 %v1633
        %v1682 = vunpack.c.l.b16 %v1634
        %v1683 = vunpack.c.l.b16 %v1635
        %v1684 = vunpack.c.l.b16 %v1636
        %v1685 = vunpack.c.l.b16 %v1637
        %v1686 = vunpack.c.l.b16 %v1638
        %v1687 = vunpack.c.l.b16 %v1639
        %v1688 = vunpack.c.l.b16 %v1640
        %v1689 = vunpack.c.l.b16 %v1641
        %v1690 = vunpack.c.l.b16 %v1642
        %v1691 = vunpack.c.l.b16 %v1643
        %v1692 = vunpack.c.l.b16 %v1644
        %v1693 = vunpack.c.l.b16 %v1645
        %v1694 = vunpack.c.l.b16 %v1646
        %v1695 = vpack.c.b16 %v1680, %v1679
        %v1696 = vpack.c.b16 %v1682, %v1681
        %v1697 = vpack.c.b16 %v1684, %v1683
        %v1698 = vpack.c.b16 %v1686, %v1685
        %v1699 = vpack.c.b16 %v1688, %v1687
        %v1700 = vpack.c.b16 %v1690, %v1689
        %v1701 = vpack.c.b16 %v1692, %v1691
        %v1702 = vpack.c.b16 %v1694, %v1693
        %v1727 = vunpack.c.l.b16 %v1647
        %v1728 = vunpack.c.l.b16 %v1648
        %v1729 = vunpack.c.l.b16 %v1649
        %v1730 = vunpack.c.l.b16 %v1650
        %v1731 = vunpack.c.l.b16 %v1651
        %v1732 = vunpack.c.l.b16 %v1652
        %v1733 = vunpack.c.l.b16 %v1653
        %v1734 = vunpack.c.l.b16 %v1654
        %v1735 = vunpack.c.l.b16 %v1655
        %v1736 = vunpack.c.l.b16 %v1656
        %v1737 = vunpack.c.l.b16 %v1657
        %v1738 = vunpack.c.l.b16 %v1658
        %v1739 = vunpack.c.l.b16 %v1659
        %v1740 = vunpack.c.l.b16 %v1660
        %v1741 = vunpack.c.l.b16 %v1661
        %v1742 = vunpack.c.l.b16 %v1662
        %v1743 = vpack.c.b16 %v1728, %v1727
        %v1744 = vpack.c.b16 %v1730, %v1729
        %v1745 = vpack.c.b16 %v1732, %v1731
        %v1746 = vpack.c.b16 %v1734, %v1733
        %v1747 = vpack.c.b16 %v1736, %v1735
        %v1748 = vpack.c.b16 %v1738, %v1737
        %v1749 = vpack.c.b16 %v1740, %v1739
        %v1750 = vpack.c.b16 %v1742, %v1741
        %v1759 = vld [vmem:[%s3 + $0x2] sm:$0x1]
        %v1760 = vperm.slane %v1759, 0
        %1761 = vmatpush.bf16.msra.mxu0 %v1702
        %1762 = vmatpush.bf16.msra.mxu0 %v1701
        %1763 = vmatpush.bf16.msra.mxu0 %v1700
        %1764 = vmatpush.bf16.msra.mxu0 %v1699
        %1765 = vmatpush.bf16.msra.mxu0 %v1698
        %1766 = vmatpush.bf16.msra.mxu0 %v1697
        %1767 = vmatpush.bf16.msra.mxu0 %v1696
        %1768 = vmatpush.bf16.msra.mxu0 %v1695
        %1769 = vmatmul.bf16.gmra.mxu0 %v741
        %v1770 = vpop.f32.mrf.mxu0
        %v1771 = vadd.f32 %v1760, %v1770
        %v1772 = vpop.f32.mrf.mxu0
        %v1773 = vadd.f32 %v1760, %v1772
        %1774 = vmatmul.bf16.gmra.mxu0 %v742
        %v1775 = vpop.f32.mrf.mxu0
        %v1776 = vadd.f32 %v1760, %v1775
        %v1777 = vpop.f32.mrf.mxu0
        %v1778 = vadd.f32 %v1760, %v1777
        %1779 = vmatmul.bf16.gmra.mxu0 %v743
        %v1780 = vpop.f32.mrf.mxu0
        %v1781 = vadd.f32 %v1760, %v1780
        %v1782 = vpop.f32.mrf.mxu0
        %v1783 = vadd.f32 %v1760, %v1782
        %1784 = vmatmul.bf16.gmra.mxu0 %v744
        %v1785 = vpop.f32.mrf.mxu0
        %v1786 = vadd.f32 %v1760, %v1785
        %v1787 = vpop.f32.mrf.mxu0
        %v1788 = vadd.f32 %v1760, %v1787
        %1789 = vmatmul.bf16.gmra.mxu0 %v745
        %v1790 = vpop.f32.mrf.mxu0
        %v1791 = vadd.f32 %v1760, %v1790
        %v1792 = vpop.f32.mrf.mxu0
        %v1793 = vadd.f32 %v1760, %v1792
        %1794 = vmatmul.bf16.gmra.mxu0 %v746
        %v1795 = vpop.f32.mrf.mxu0
        %v1796 = vadd.f32 %v1760, %v1795
        %v1797 = vpop.f32.mrf.mxu0
        %v1798 = vadd.f32 %v1760, %v1797
        %1799 = vmatmul.bf16.gmra.mxu0 %v747
        %v1800 = vpop.f32.mrf.mxu0
        %v1801 = vadd.f32 %v1760, %v1800
        %v1802 = vpop.f32.mrf.mxu0
        %v1803 = vadd.f32 %v1760, %v1802
        %1804 = vmatmul.bf16.gmra.mxu0 %v748
        %v1805 = vpop.f32.mrf.mxu0
        %v1806 = vadd.f32 %v1760, %v1805
        %v1807 = vpop.f32.mrf.mxu0
        %v1808 = vadd.f32 %v1760, %v1807
        %1809 = vdwg.mxu0
        %1810 = vmatpush.bf16.msra.mxu0 %v1750
        %1811 = vmatpush.bf16.msra.mxu0 %v1749
        %1812 = vmatpush.bf16.msra.mxu0 %v1748
        %1813 = vmatpush.bf16.msra.mxu0 %v1747
        %1814 = vmatpush.bf16.msra.mxu0 %v1746
        %1815 = vmatpush.bf16.msra.mxu0 %v1745
        %1816 = vmatpush.bf16.msra.mxu0 %v1744
        %1817 = vmatpush.bf16.msra.mxu0 %v1743
        %1818 = vmatmul.bf16.gmra.mxu0 %v741
        %v1819 = vpop.f32.mrf.mxu0
        %v1820 = vadd.f32 %v1760, %v1819
        %v1821 = vpop.f32.mrf.mxu0
        %v1822 = vadd.f32 %v1760, %v1821
        %1823 = vmatmul.bf16.gmra.mxu0 %v742
        %v1824 = vpop.f32.mrf.mxu0
        %v1825 = vadd.f32 %v1760, %v1824
        %v1826 = vpop.f32.mrf.mxu0
        %v1827 = vadd.f32 %v1760, %v1826
        %1828 = vmatmul.bf16.gmra.mxu0 %v743
        %v1829 = vpop.f32.mrf.mxu0
        %v1830 = vadd.f32 %v1760, %v1829
        %v1831 = vpop.f32.mrf.mxu0
        %v1832 = vadd.f32 %v1760, %v1831
        %1833 = vmatmul.bf16.gmra.mxu0 %v744
        %v1834 = vpop.f32.mrf.mxu0
        %v1835 = vadd.f32 %v1760, %v1834
        %v1836 = vpop.f32.mrf.mxu0
        %v1837 = vadd.f32 %v1760, %v1836
        %1838 = vmatmul.bf16.gmra.mxu0 %v745
        %v1839 = vpop.f32.mrf.mxu0
        %v1840 = vadd.f32 %v1760, %v1839
        %v1841 = vpop.f32.mrf.mxu0
        %v1842 = vadd.f32 %v1760, %v1841
        %1843 = vmatmul.bf16.gmra.mxu0 %v746
        %v1844 = vpop.f32.mrf.mxu0
        %v1845 = vadd.f32 %v1760, %v1844
        %v1846 = vpop.f32.mrf.mxu0
        %v1847 = vadd.f32 %v1760, %v1846
        %1848 = vmatmul.bf16.gmra.mxu0 %v747
        %v1849 = vpop.f32.mrf.mxu0
        %v1850 = vadd.f32 %v1760, %v1849
        %v1851 = vpop.f32.mrf.mxu0
        %v1852 = vadd.f32 %v1760, %v1851
        %1853 = vmatmul.bf16.gmra.mxu0 %v748
        %v1854 = vpop.f32.mrf.mxu0
        %v1855 = vadd.f32 %v1760, %v1854
        %v1856 = vpop.f32.mrf.mxu0
        %v1857 = vadd.f32 %v1760, %v1856
        %1858 = vdwg.mxu0
        %v1859 = vmax.f32 %v1771, 0.0
        %v1860 = vmax.f32 %v1820, 0.0
        %v1861 = vmax.f32 %v1773, 0.0
        %v1862 = vmax.f32 %v1822, 0.0
        %v1863 = vmax.f32 %v1776, 0.0
        %v1864 = vmax.f32 %v1825, 0.0
        %v1865 = vmax.f32 %v1778, 0.0
        %v1866 = vmax.f32 %v1827, 0.0
        %v1867 = vmax.f32 %v1781, 0.0
        %v1868 = vmax.f32 %v1830, 0.0
        %v1869 = vmax.f32 %v1783, 0.0
        %v1870 = vmax.f32 %v1832, 0.0
        %v1871 = vmax.f32 %v1786, 0.0
        %v1872 = vmax.f32 %v1835, 0.0
        %v1873 = vmax.f32 %v1788, 0.0
        %v1874 = vmax.f32 %v1837, 0.0
        %v1875 = vmax.f32 %v1791, 0.0
        %v1876 = vmax.f32 %v1840, 0.0
        %v1877 = vmax.f32 %v1793, 0.0
        %v1878 = vmax.f32 %v1842, 0.0
        %v1879 = vmax.f32 %v1796, 0.0
        %v1880 = vmax.f32 %v1845, 0.0
        %v1881 = vmax.f32 %v1798, 0.0
        %v1882 = vmax.f32 %v1847, 0.0
        %v1883 = vmax.f32 %v1801, 0.0
        %v1884 = vmax.f32 %v1850, 0.0
        %v1885 = vmax.f32 %v1803, 0.0
        %v1886 = vmax.f32 %v1852, 0.0
        %v1887 = vmax.f32 %v1806, 0.0
        %v1888 = vmax.f32 %v1855, 0.0
        %v1889 = vmax.f32 %v1808, 0.0
        %v1890 = vmax.f32 %v1857, 0.0
        %v1891 = vpack.c.bf16 %v1861, %v1859
        %v1892 = vpack.c.bf16 %v1862, %v1860
        %v1893 = vpack.c.bf16 %v1865, %v1863
        %v1894 = vpack.c.bf16 %v1866, %v1864
        %v1895 = vpack.c.bf16 %v1869, %v1867
        %v1896 = vpack.c.bf16 %v1870, %v1868
        %v1897 = vpack.c.bf16 %v1873, %v1871
        %v1898 = vpack.c.bf16 %v1874, %v1872
        %v1899 = vpack.c.bf16 %v1877, %v1875
        %v1900 = vpack.c.bf16 %v1878, %v1876
        %v1901 = vpack.c.bf16 %v1881, %v1879
        %v1902 = vpack.c.bf16 %v1882, %v1880
        %v1903 = vpack.c.bf16 %v1885, %v1883
        %v1904 = vpack.c.bf16 %v1886, %v1884
        %v1905 = vpack.c.bf16 %v1889, %v1887
        %v1906 = vpack.c.bf16 %v1890, %v1888
        %v1907 = vld [vmem:[%s4] sm:$0xf]
        %v1908 = vld [vmem:[%s4 + $0x4] sm:$0xf]
        %v1911 = vunpack.c.l.b16 %v1907
        %v1912 = vunpack.c.l.b16 %v1908
        %v1913 = vpack.c.b16 %v1912, %v1911
        %1915 = vmatpush.bf16.msra.mxu0 %v1905
        %1916 = vmatpush.bf16.msra.mxu0 %v1903
        %1917 = vmatpush.bf16.msra.mxu0 %v1901
        %1918 = vmatpush.bf16.msra.mxu0 %v1899
        %1919 = vmatpush.bf16.msra.mxu0 %v1897
        %1920 = vmatpush.bf16.msra.mxu0 %v1895
        %1921 = vmatpush.bf16.msra.mxu0 %v1893
        %1922 = vmatpush.bf16.msra.mxu0 %v1891
        %1923 = vmatmul.bf16.gmra.mxu0 %v1913
        %v1924 = vpop.f32.mrf.mxu0
        %v1925 = vadd.f32 0.0, %v1924
        %v1926 = vpop.f32.mrf.mxu0
        %v1927 = vadd.f32 0.0, %v1926
        %1928 = vdwg.mxu0
        %1929 = vmatpush.bf16.msra.mxu0 %v1906
        %1930 = vmatpush.bf16.msra.mxu0 %v1904
        %1931 = vmatpush.bf16.msra.mxu0 %v1902
        %1932 = vmatpush.bf16.msra.mxu0 %v1900
        %1933 = vmatpush.bf16.msra.mxu0 %v1898
        %1934 = vmatpush.bf16.msra.mxu0 %v1896
        %1935 = vmatpush.bf16.msra.mxu0 %v1894
        %1936 = vmatpush.bf16.msra.mxu0 %v1892
        %1937 = vmatmul.bf16.gmra.mxu0 %v1913
        %v1938 = vpop.f32.mrf.mxu0
        %v1939 = vadd.f32 0.0, %v1938
        %v1940 = vpop.f32.mrf.mxu0
        %v1941 = vadd.f32 0.0, %v1940
        %1942 = vdwg.mxu0
        %v1943 = vld [vmem:[%s3 + $0x3] sm:$0x1]
        %v1944 = vlaneseq
        %v1945 = vand.u32 %v1944, 127
        %vm1946 = vcmp.lt.s32.totalorder %v1945, 2
        %v1947 = vpack.c.bf16 %v1927, %v1925
        %v1948 = vperm.slane %v1943, 0
        %v1965 = vunpack.c.l.b16 %v299
        %v1966 = vunpack.c.l.b16 %v300
        %v1967 = vunpack.c.l.b16 %v301
        %v1968 = vunpack.c.l.b16 %v302
        %v1969 = vunpack.c.l.b16 %v303
        %v1970 = vunpack.c.l.b16 %v304
        %v1971 = vunpack.c.l.b16 %v305
        %v1972 = vunpack.c.l.b16 %v306
        %v1973 = vunpack.c.l.b16 %v307
        %v1974 = vunpack.c.l.b16 %v308
        %v1975 = vunpack.c.l.b16 %v309
        %v1976 = vunpack.c.l.b16 %v310
        %v1977 = vunpack.c.l.b16 %v311
        %v1978 = vunpack.c.l.b16 %v312
        %v1979 = vunpack.c.l.b16 %v313
        %v1980 = vunpack.c.l.b16 %v314
        %v1981 = vpack.c.b16 %v1966, %v1965
        %v1982 = vpack.c.b16 %v1968, %v1967
        %v1983 = vpack.c.b16 %v1970, %v1969
        %v1984 = vpack.c.b16 %v1972, %v1971
        %v1985 = vpack.c.b16 %v1974, %v1973
        %v1986 = vpack.c.b16 %v1976, %v1975
        %v1987 = vpack.c.b16 %v1978, %v1977
        %v1988 = vpack.c.b16 %v1980, %v1979
        %1997 = vmatpush.bf16.msra.mxu0 %v1988
        %1998 = vmatpush.bf16.msra.mxu0 %v1987
        %1999 = vmatpush.bf16.msra.mxu0 %v1986
        %2000 = vmatpush.bf16.msra.mxu0 %v1985
        %2001 = vmatpush.bf16.msra.mxu0 %v1984
        %2002 = vmatpush.bf16.msra.mxu0 %v1983
        %2003 = vmatpush.bf16.msra.mxu0 %v1982
        %2004 = vmatpush.bf16.msra.mxu0 %v1981
        %2005 = vmatmul.bf16.gmra.mxu0 %v1947
        %v2006 = vpop.f32.mrf.mxu0
        %v2007 = vadd.f32 %v1948, %v2006
        %v2008 = vpop.f32.mrf.mxu0
        %v2009 = vadd.f32 %v1948, %v2008
        %2010 = vdwg.mxu0
        %v2011 = vsel %vm1946, %v2007, -1e+30
        %v2012 = vsel %vm1946, %v2009, -1e+30
        %2013 = vmax.xlane.f32.xlu0 %v2011
        %v2014 = vpop.xlane.xlu0 %2013
        %2015 = vmax.xlane.f32.xlu0 %v2012
        %v2016 = vpop.xlane.xlu0 %2015
        %v2017 = vsub.f32 %v2011, %v2014
        %v2018 = vsub.f32 %v2012, %v2016
        %v2019 = vmul.f32 %v2017, 1.442695
        %v2020 = vpow.pop %v2019
        %v2021 = vmul.f32 %v2018, 1.442695
        %v2022 = vpow.pop %v2021
        %v2023 = vsel %vm1946, %v2020, 0.0
        %v2024 = vsel %vm1946, %v2022, 0.0
        %2025 = vadd.xlane.f32.xlu0 %v2023
        %v2026 = vpop.xlane.xlu0 %2025
        %2027 = vadd.xlane.f32.xlu0 %v2024
        %v2028 = vpop.xlane.xlu0 %2027
        %v2029 = vlog2.pop %v2026
        %v2030 = vmul.f32 %v2029, 0.6931472
        %v2031 = vlog2.pop %v2028
        %v2032 = vmul.f32 %v2031, 0.6931472
        %v2033 = vsub.f32 %v2017, %v2030
        %v2034 = vsub.f32 %v2018, %v2032
        %2035 = vst [vmem:[%s237] sm:$0xff] %v2033
        %2036 = vst [vmem:[%s237 + $0x8] sm:$0xff] %v2034
        %v2037 = vpack.c.bf16 %v1941, %v1939
        %2038 = vmatpush.bf16.msra.mxu0 %v1988
        %2039 = vmatpush.bf16.msra.mxu0 %v1987
        %2040 = vmatpush.bf16.msra.mxu0 %v1986
        %2041 = vmatpush.bf16.msra.mxu0 %v1985
        %2042 = vmatpush.bf16.msra.mxu0 %v1984
        %2043 = vmatpush.bf16.msra.mxu0 %v1983
        %2044 = vmatpush.bf16.msra.mxu0 %v1982
        %2045 = vmatpush.bf16.msra.mxu0 %v1981
        %2046 = vmatmul.bf16.gmra.mxu0 %v2037
        %v2047 = vpop.f32.mrf.mxu0
        %v2048 = vadd.f32 %v1948, %v2047
        %v2049 = vpop.f32.mrf.mxu0
        %v2050 = vadd.f32 %v1948, %v2049
        %2051 = vdwg.mxu0
        %v2052 = vsel %vm1946, %v2048, -1e+30
        %v2053 = vsel %vm1946, %v2050, -1e+30
        %2054 = vmax.xlane.f32.xlu0 %v2052
        %v2055 = vpop.xlane.xlu0 %2054
        %2056 = vmax.xlane.f32.xlu0 %v2053
        %v2057 = vpop.xlane.xlu0 %2056
        %v2058 = vsub.f32 %v2052, %v2055
        %v2059 = vsub.f32 %v2053, %v2057
        %v2060 = vmul.f32 %v2058, 1.442695
        %v2061 = vpow.pop %v2060
        %v2062 = vmul.f32 %v2059, 1.442695
        %v2063 = vpow.pop %v2062
        %v2064 = vsel %vm1946, %v2061, 0.0
        %v2065 = vsel %vm1946, %v2063, 0.0
        %2066 = vadd.xlane.f32.xlu0 %v2064
        %v2067 = vpop.xlane.xlu0 %2066
        %2068 = vadd.xlane.f32.xlu0 %v2065
        %v2069 = vpop.xlane.xlu0 %2068
        %v2070 = vlog2.pop %v2067
        %v2071 = vmul.f32 %v2070, 0.6931472
        %v2072 = vlog2.pop %v2069
        %v2073 = vmul.f32 %v2072, 0.6931472
        %v2074 = vsub.f32 %v2058, %v2071
        %v2075 = vsub.f32 %v2059, %v2073
        %s2076 = scalar_lea.vmem %s237, 16 [#allocation5]
        %2077 = vst [vmem:[%s2076] sm:$0xff] %v2074
        %2078 = vst [vmem:[%s2076 + $0x8] sm:$0xff] %v2075
        %s2079 = sand.u32 %s138, 1
        %s2080 = scalar_lea.sflag [#allocation4], %s2079
        %s2081 = sand.u32 %s138, 1
        %s2082 = smul.addr %s2081, 32
        %s2083 = scalar_lea.vmem [#allocation5], %s2082
        // Predicated region
        $region45: #{tpu_custom_call.1} parent=39 // pred_check
          %p2084 = pneg %p148
        $region46: #{tpu_custom_call.1} parent=39 // pred_check_branch
          %2086 = sbr.rel (%p2084) target = $region48
        $region47: #{tpu_custom_call.1} parent=39 // pred_region
          %s2087 = smul.u32 2, %s20
          %2089 = vsyncadd %s2080, 0
          %s2090 = smul.addr %s2087, 2
          %s2091 = smul.addr %s2090, 8
          %s2092 = scalar_lea.hbm %s5, %s2091
          %s2093 = sshll.u32 %s2083, 4
          %s2094 = int_to_ptr.vmem [resolvable:$true] %s2093
          %s2095 = sshll.u32 %s2092, 4
          %s2096 = int_to_ptr.hbm [resolvable:$true] %s2095
          %2101 = dma.vmem_to_hbm [thread:$0]  %s2094, 512, %s2096, %s2080, 128, 128, 8
        $region48: #{tpu_custom_call.1} parent=39 // pred_fallthru
          _
      $region40: #{tpu_custom_call.1} parent=5 // pred_fallthru
        _
      %p2102 = scmp.le.s32.totalorder 2, %s15
      // Predicated region
      $region49: #{tpu_custom_call.1} parent=5 // pred_check
        %p2103 = pneg %p2102
      $region50: #{tpu_custom_call.1} parent=5 // pred_check_branch
        %2105 = sbr.rel (%p2103) target = $region52
      $region51: #{tpu_custom_call.1} parent=5 // pred_region
        %s2106 = ssub.s32 %s15, 2
        // Predicated region
        $region53: #{tpu_custom_call.1} parent=51 // pred_check
          %p2107 = pneg %p154
        $region54: #{tpu_custom_call.1} parent=51 // pred_check_branch
          %2109 = sbr.rel (%p2107) target = $region56
        $region55: #{tpu_custom_call.1} parent=51 // pred_region
          %s2110 = sand.u32 %s139, 1
          %s2111 = scalar_lea.sflag [#allocation4], %s2110
          %s2112 = sand.u32 %s139, 1
          %s2113 = smul.addr %s2112, 32
          %s2114 = scalar_lea.vmem [#allocation5], %s2113
          %2116 = dma.done %s2111, 512
        $region56: #{tpu_custom_call.1} parent=51 // pred_fallthru
          _
      $region52: #{tpu_custom_call.1} parent=5 // pred_fallthru
        _
    $region6: #{tpu_custom_call.1} parent=1 // loop_footer
      %s19 = sadd.s32 1, %s15
    $region7: #{tpu_custom_call.1} parent=1 // loop_footer_branch
      %14 = sbr.rel target = $region3
    $region8: #{tpu_custom_call.1} parent=1 // loop_exit
      _
    %2117 = vsyncpa [#allocation3], 1
    %s2118 = scalar_lea.sflag [#allocation3], 1
    %2119 = vsyncpa %s2118, 1
    %2120 = vsyncpa [#allocation4], 1
    %s2121 = scalar_lea.sflag [#allocation4], 1
    %2122 = vsyncpa %s2121, 1

</llo_original>
